<compile_context>
chip_gen: v7x
topology: tpu7x:2x2x1
jax: 0.10.0
libtpu: 0.0.40
codegen_flags: <defaults>
</compile_context>

<pallas_src>
import jax
import jax.numpy as jnp
from jax.experimental import pallas as pl
from jax.experimental.pallas import tpu as pltpu


def _round_up(n, m):
    return ((n + m - 1) // m) * m


def mlp_kernel(x_ref, w1_ref, b1_ref, w2_ref, b2_ref, w3_ref, b3_ref, o_ref):
    x = x_ref[...]                                                     # (TB, 256)

    # fc1 + ReLU (MXU)
    h1 = jnp.dot(x, w1_ref[...], preferred_element_type=jnp.float32) + b1_ref[...]
    h1 = jnp.maximum(h1, 0.0)                                          # (TB, 64)

    # fc2 + ReLU (MXU)
    h2 = jnp.dot(h1, w2_ref[...], preferred_element_type=jnp.float32) + b2_ref[...]
    h2 = jnp.maximum(h2, 0.0)                                          # (TB, 64)

    # fc3 + ReLU: (TB,64) x (64,) -> (TB,1) as VPU multiply + XLU lane reduction
    # (a (64,1) matmul would waste an MXU pass on a single output lane).
    h3 = jnp.sum(h2 * w3_ref[...], axis=-1, keepdims=True) + b3_ref[0, 0]
    h3 = jnp.maximum(h3, 0.0)                                          # (TB, 1)

    # sigmoid: exp on EUP, reciprocal on EUP (approx) — keeps the epilogue off VALU.
    o_ref[...] = pl.reciprocal(1.0 + jnp.exp(-h3), approx=True)


def net_forward(x, params, *, tb=512):
    """x: (B, 256) float32 -> (B, 1) float32."""
    w1, b1, w2, b2, w3, b3 = params
    B, D = x.shape
    assert D == 256

    # Weights stored as (in, out); fc3 weight reshaped to a (1, 64) row for the
    # VPU-reduction path, fc3 bias as a (1, 1) SMEM scalar.
    w3_row = w3.reshape(1, 64)
    b3_s = b3.reshape(1, 1)

    # Tile the batch: TB rows per grid step (multiple of 8 sublanes). Pad B up so
    # every grid step is a full tile; padded rows are computed and discarded.
    tb = min(tb, _round_up(B, 8))
    B_pad = _round_up(B, tb)
    if B_pad != B:
        x = jnp.pad(x, ((0, B_pad - B), (0, 0)))
    grid = (pl.cdiv(B_pad, tb),)

    const = lambda shape: pl.BlockSpec(shape, lambda i: (0, 0))

    flops = 2 * B_pad * (256 * 64 + 64 * 64 + 64)
    bytes_accessed = (B_pad * 256 * 4                      # x read
                      + (256 * 64 + 64 * 64 + 64 + 64 + 64 + 1) * 4   # params
                      + B_pad * 4)                         # out write

    out = pl.pallas_call(
        mlp_kernel,
        out_shape=jax.ShapeDtypeStruct((B_pad, 1), jnp.float32),
        grid=grid,
        in_specs=[
            pl.BlockSpec((tb, 256), lambda i: (i, 0)),     # x: tiled over batch
            const((256, 64)),                              # w1 (resident)
            const((1, 64)),                                # b1
            const((64, 64)),                               # w2
            const((1, 64)),                                # b2
            const((1, 64)),                                # w3 as a row
            pl.BlockSpec(memory_space=pltpu.MemorySpace.SMEM),  # b3 scalar in SMEM
        ],
        out_specs=pl.BlockSpec((tb, 1), lambda i: (i, 0)),
        compiler_params=pltpu.CompilerParams(
            dimension_semantics=("parallel",),             # megacore on v7x
            vmem_limit_bytes=32 * 1024 * 1024,             # explicit, fits v5e/v6e/v7x
        ),
        cost_estimate=pl.CostEstimate(
            flops=flops,
            transcendentals=2 * B_pad,                     # exp + reciprocal per row
            bytes_accessed=bytes_accessed,
        ),
    )(x, w1, b1, w2, b2, w3_row, b3_s)

    return out[:B]


def init_params(key):
    """Deterministic init matching PyTorch nn.Linear default: U(-1/sqrt(fan_in), +1/sqrt(fan_in)).
    Weights stored as (in_features, out_features)."""
    def linear(key, fan_in, fan_out):
        kw, kb = jax.random.split(key)
        bound = 1.0 / jnp.sqrt(fan_in)
        w = jax.random.uniform(kw, (fan_in, fan_out), jnp.float32, -bound, bound)
        b = jax.random.uniform(kb, (1, fan_out), jnp.float32, -bound, bound)
        return w, b

    k1, k2, k3 = jax.random.split(key, 3)
    w1, b1 = linear(k1, 256, 64)
    w2, b2 = linear(k2, 64, 64)
    w3, b3 = linear(k3, 64, 1)
    return (w1, b1, w2, b2, w3, b3)


def reference_forward(x, params):
    """Pure-JAX reference for sanity checking."""
    w1, b1, w2, b2, w3, b3 = params
    h = jax.nn.relu(x @ w1 + b1)
    h = jax.nn.relu(h @ w2 + b2)
    h = jax.nn.relu(h @ w3 + b3)
    return jax.nn.sigmoid(h)


if __name__ == "__main__":
    key = jax.random.PRNGKey(0)
    kx, kp = jax.random.split(key)
    params = init_params(kp)

    # Case 1: batch large enough to exercise the tiled grid (4 tiles of 512 rows).
    B1 = 2048
    x1 = jax.random.normal(kx, (B1, 256), jnp.float32)
    out1 = jax.block_until_ready(net_forward(x1, params))
    ref1 = reference_forward(x1, params)
    assert out1.shape == (B1, 1)
    assert jnp.allclose(out1, ref1, atol=1e-3, rtol=1e-3), float(jnp.max(jnp.abs(out1 - ref1)))

    # Case 2: small ragged batch exercising the padding path.
    B2 = 10
    x2 = jax.random.normal(jax.random.fold_in(kx, 1), (B2, 256), jnp.float32)
    out2 = jax.block_until_ready(net_forward(x2, params))
    ref2 = reference_forward(x2, params)
    assert out2.shape == (B2, 1)
    assert jnp.allclose(out2, ref2, atol=1e-3, rtol=1e-3), float(jnp.max(jnp.abs(out2 - ref2)))

    print("KERNEL_OK")
</pallas_src>

<mosaic_0001>
module attributes {stable_mosaic.version = 11 : i64} {
  func.func @mlp_kernel(%arg0: i32, %arg1: memref<512x256xf32, #tpu.memory_space<vmem>>, %arg2: memref<256x64xf32, #tpu.memory_space<vmem>>, %arg3: memref<1x64xf32, #tpu.memory_space<vmem>>, %arg4: memref<64x64xf32, #tpu.memory_space<vmem>>, %arg5: memref<1x64xf32, #tpu.memory_space<vmem>>, %arg6: memref<1x64xf32, #tpu.memory_space<vmem>>, %arg7: memref<1x1xf32, #tpu.memory_space<smem>>, %arg8: memref<512x1xf32, #tpu.memory_space<vmem>>) attributes {dimension_semantics = [#tpu.dimension_semantics<parallel>], iteration_bounds = array<i64: 4>, scalar_prefetch = 0 : i64, scratch_operands = 0 : i64, tpu.core_type = #tpu.core_type<tc>, window_params = [{transform_indices = @transform_0, window_bounds = array<i64: 512, 256>}, {pipeline_mode = #tpu.pipeline_mode<synchronous>, transform_indices = @transform_1, window_bounds = array<i64: 256, 64>}, {pipeline_mode = #tpu.pipeline_mode<synchronous>, transform_indices = @transform_2, window_bounds = array<i64: 1, 64>}, {pipeline_mode = #tpu.pipeline_mode<synchronous>, transform_indices = @transform_3, window_bounds = array<i64: 64, 64>}, {pipeline_mode = #tpu.pipeline_mode<synchronous>, transform_indices = @transform_4, window_bounds = array<i64: 1, 64>}, {pipeline_mode = #tpu.pipeline_mode<synchronous>, transform_indices = @transform_5, window_bounds = array<i64: 1, 64>}, {transform_indices = @transform_6, window_bounds = array<i64: 1, 1>}, {transform_indices = @transform_7, window_bounds = array<i64: 512, 1>}]} {
    %c0 = arith.constant 0 : index
    %c0_0 = arith.constant 0 : index
    %0 = vector.load %arg1[%c0, %c0_0] : memref<512x256xf32, #tpu.memory_space<vmem>>, vector<512x256xf32>
    %c0_1 = arith.constant 0 : index
    %c0_2 = arith.constant 0 : index
    %1 = vector.load %arg2[%c0_1, %c0_2] : memref<256x64xf32, #tpu.memory_space<vmem>>, vector<256x64xf32>
    %cst = arith.constant dense<0.000000e+00> : vector<512x64xf32>
    %2 = tpu.matmul %0, %1, %cst {dimension_numbers = #tpu.dot_dimension_numbers<[1], [0], [0], [1], [0, 0, 1, 1], [], []>} : vector<512x256xf32>, vector<256x64xf32>, vector<512x64xf32> -> vector<512x64xf32>
    %c0_3 = arith.constant 0 : index
    %c0_4 = arith.constant 0 : index
    %3 = vector.load %arg3[%c0_3, %c0_4] : memref<1x64xf32, #tpu.memory_space<vmem>>, vector<1x64xf32>
    %4 = vector.broadcast %3 : vector<1x64xf32> to vector<512x64xf32>
    %5 = arith.addf %2, %4 : vector<512x64xf32>
    %cst_5 = arith.constant 0.000000e+00 : f32
    %6 = vector.broadcast %cst_5 : f32 to vector<512x64xf32>
    %7 = arith.maximumf %5, %6 : vector<512x64xf32>
    %c0_6 = arith.constant 0 : index
    %c0_7 = arith.constant 0 : index
    %8 = vector.load %arg4[%c0_6, %c0_7] : memref<64x64xf32, #tpu.memory_space<vmem>>, vector<64x64xf32>
    %cst_8 = arith.constant dense<0.000000e+00> : vector<512x64xf32>
    %9 = tpu.matmul %7, %8, %cst_8 {dimension_numbers = #tpu.dot_dimension_numbers<[1], [0], [0], [1], [0, 0, 1, 1], [], []>} : vector<512x64xf32>, vector<64x64xf32>, vector<512x64xf32> -> vector<512x64xf32>
    %c0_9 = arith.constant 0 : index
    %c0_10 = arith.constant 0 : index
    %10 = vector.load %arg5[%c0_9, %c0_10] : memref<1x64xf32, #tpu.memory_space<vmem>>, vector<1x64xf32>
    %11 = vector.broadcast %10 : vector<1x64xf32> to vector<512x64xf32>
    %12 = arith.addf %9, %11 : vector<512x64xf32>
    %cst_11 = arith.constant 0.000000e+00 : f32
    %13 = vector.broadcast %cst_11 : f32 to vector<512x64xf32>
    %14 = arith.maximumf %12, %13 : vector<512x64xf32>
    %c0_12 = arith.constant 0 : index
    %c0_13 = arith.constant 0 : index
    %15 = vector.load %arg6[%c0_12, %c0_13] : memref<1x64xf32, #tpu.memory_space<vmem>>, vector<1x64xf32>
    %16 = vector.broadcast %15 : vector<1x64xf32> to vector<512x64xf32>
    %17 = arith.mulf %14, %16 : vector<512x64xf32>
    %cst_14 = arith.constant dense<0.000000e+00> : vector<512xf32>
    %18 = vector.multi_reduction <add>, %17, %cst_14 [1] : vector<512x64xf32> to vector<512xf32>
    %19 = vector.shape_cast %18 : vector<512xf32> to vector<512x1xf32>
    %c0_15 = arith.constant 0 : index
    %c0_16 = arith.constant 0 : index
    %20 = memref.load %arg7[%c0_15, %c0_16] : memref<1x1xf32, #tpu.memory_space<smem>>
    %21 = vector.broadcast %20 : f32 to vector<512x1xf32>
    %22 = arith.addf %19, %21 : vector<512x1xf32>
    %cst_17 = arith.constant 0.000000e+00 : f32
    %23 = vector.broadcast %cst_17 : f32 to vector<512x1xf32>
    %24 = arith.maximumf %22, %23 : vector<512x1xf32>
    %cst_18 = arith.constant 0.000000e+00 : f32
    %25 = vector.broadcast %cst_18 : f32 to vector<512x1xf32>
    %26 = arith.subf %25, %24 : vector<512x1xf32>
    %27 = math.exp %26 : vector<512x1xf32>
    %cst_19 = arith.constant 1.000000e+00 : f32
    %28 = vector.broadcast %cst_19 : f32 to vector<512x1xf32>
    %29 = arith.addf %28, %27 : vector<512x1xf32>
    %30 = tpu.reciprocal %29 {approx = true} : vector<512x1xf32> -> vector<512x1xf32>
    %c0_20 = arith.constant 0 : index
    %c0_21 = arith.constant 0 : index
    %31 = vector.load %arg8[%c0_20, %c0_21] : memref<512x1xf32, #tpu.memory_space<vmem>>, vector<512x1xf32>
    tpu.vector_store %arg8[%c0_20, %c0_21], %30 {strides = array<i32>} : memref<512x1xf32, #tpu.memory_space<vmem>>, vector<512x1xf32>,
    return
  }
  func.func @transform_0(%arg0: i32) -> (i32, i32) {
    %c0_i32 = arith.constant 0 : i32
    %c0_i32_0 = arith.constant 0 : i32
    return %arg0, %c0_i32 : i32, i32
  }
  func.func @transform_1(%arg0: i32) -> (i32, i32) {
    %c0_i32 = arith.constant 0 : i32
    %c0_i32_0 = arith.constant 0 : i32
    %c0_i32_1 = arith.constant 0 : i32
    return %c0_i32, %c0_i32_0 : i32, i32
  }
  func.func @transform_2(%arg0: i32) -> (i32, i32) {
    %c0_i32 = arith.constant 0 : i32
    %c0_i32_0 = arith.constant 0 : i32
    %c0_i32_1 = arith.constant 0 : i32
    return %c0_i32, %c0_i32_0 : i32, i32
  }
  func.func @transform_3(%arg0: i32) -> (i32, i32) {
    %c0_i32 = arith.constant 0 : i32
    %c0_i32_0 = arith.constant 0 : i32
    %c0_i32_1 = arith.constant 0 : i32
    return %c0_i32, %c0_i32_0 : i32, i32
  }
  func.func @transform_4(%arg0: i32) -> (i32, i32) {
    %c0_i32 = arith.constant 0 : i32
    %c0_i32_0 = arith.constant 0 : i32
    %c0_i32_1 = arith.constant 0 : i32
    return %c0_i32, %c0_i32_0 : i32, i32
  }
  func.func @transform_5(%arg0: i32) -> (i32, i32) {
    %c0_i32 = arith.constant 0 : i32
    %c0_i32_0 = arith.constant 0 : i32
    %c0_i32_1 = arith.constant 0 : i32
    return %c0_i32, %c0_i32_0 : i32, i32
  }
  func.func @transform_6(%arg0: i32) -> (i32, i32) {
    %c0_i32 = arith.constant 0 : i32
    %c0_i32_0 = arith.constant 0 : i32
    %c0_i32_1 = arith.constant 0 : i32
    return %c0_i32, %c0_i32_0 : i32, i32
  }
  func.func @transform_7(%arg0: i32) -> (i32, i32) {
    %c0_i32 = arith.constant 0 : i32
    %c0_i32_0 = arith.constant 0 : i32
    return %arg0, %c0_i32 : i32, i32
  }
}

</mosaic_0001>

<llo_original>
// kernel: tpu_custom_call.1
$region0: #{tpu_custom_call.1}
  #allocation0 [shape = 'u32[]', space=smem, size = 0x4, offset = 0x4, fixed_abs, tag = 'smem constant byte address 0x4 - core index']
  #allocation1 [shape = 'u32[144,128]{1,0:T(1,128)}', space=vmem, size = 0x12000, scoped, tag = 'internal scratch']
  #allocation2 [shape = 'f32[1,1]{1,0:T(1,128)S(6)}', space=smem, size = 0x200, scoped, tag = 'scoped memory for tpu_custom_call.1']
  %s0 = inlined_call_operand.hbm [shape: f32[2048,256], index: 0, kind: input, shape index: {}]
  %s1 = inlined_call_operand.vmem [shape: f32[256,64], index: 1, kind: input, shape index: {}]
  %s2 = inlined_call_operand.hbm [shape: f32[1,64], index: 2, kind: input, shape index: {}]
  %s3 = inlined_call_operand.hbm [shape: f32[64,64], index: 3, kind: input, shape index: {}]
  %s4 = inlined_call_operand.hbm [shape: f32[1,64], index: 4, kind: input, shape index: {}]
  %s5 = inlined_call_operand.hbm [shape: f32[1,64], index: 5, kind: input, shape index: {}]
  %s6 = inlined_call_operand.<no memory space> [shape: f32[1,1], index: 6, kind: input, shape index: {}]
  %s7 = inlined_call_operand.vmem [shape: f32[2048,1], index: 7, kind: output, shape index: {}]
  %s8 = sld [smem:[#allocation0]]
  $region81: #{tpu_custom_call.1} parent=0
    _
  %s10 = ssub.s32 1, %s8
  %s11 = scalar_select 0, %s10, %s8
  %12 = sst [smem:[#allocation2]] %s6
  $region1: #{tpu_custom_call.1} parent=0
    #allocation3 [shape = 'u8[1048576]{0}', space=vmem, size = 0x100000, scoped, tag = 'input window, operand 0']
    #allocation4 [shape = 's32[2]{0}', space=sflag, size = 0x8, scoped, tag = 'scoped memory for tpu_custom_call.1']
    #allocation5 [shape = 'u8[512]{0}', space=vmem, size = 0x400, scoped, tag = 'input window, operand 2, single buffered']
    #allocation6 [shape = 's32[1]{0}', space=sflag, size = 0x4, scoped, tag = 'scoped memory for tpu_custom_call.1']
    #allocation7 [shape = 'u8[32768]{0}', space=vmem, size = 0x8000, scoped, tag = 'input window, operand 3, single buffered']
    #allocation8 [shape = 'u8[512]{0}', space=vmem, size = 0x400, scoped, tag = 'input window, operand 4, single buffered']
    #allocation9 [shape = 's32[1]{0}', space=sflag, size = 0x4, scoped, tag = 'scoped memory for tpu_custom_call.1']
    #allocation10 [shape = 'u8[512]{0}', space=vmem, size = 0x400, scoped, tag = 'input window, operand 5, single buffered']
    %13 = vsyncpa [#allocation4], 0
    %s14 = scalar_lea.sflag [#allocation4], 1
    %15 = vsyncpa %s14, 0
    %16 = vsyncpa [#allocation6], 0
    %17 = vsyncpa [#allocation9], 0
    loop: start=0, step=1, limit=6
    $region2: #{tpu_custom_call.1} parent=1 // loop_pre_header
      _
    $region3: #{tpu_custom_call.1} parent=1 // loop_header
      %s19 = sphi 0, %s23
      %p20 = scmp.ge.s32.totalorder %s19, 6
      %s29 = sphi 0, %s31
      %s32 = sphi 0, %s29
      %s33 = sphi 0, %s32
      %s49 = sphi 0, %s33
      %s53 = sphi 0, %s53
      %s55 = sphi 0, %s53
      %s56 = sphi 0, %s55
      %s70 = sphi 0, %s56
      %s74 = sphi 0, %s74
      %s76 = sphi 0, %s74
      %s77 = sphi 0, %s76
      %s91 = sphi 0, %s77
      %s95 = sphi 0, %s95
      %s97 = sphi 0, %s95
      %s98 = sphi 0, %s97
      %s112 = sphi 0, %s98
      %s116 = sphi 0, %s116
      %s118 = sphi 0, %s116
      %s119 = sphi 0, %s118
      %s133 = sphi 0, %s119
      %s137 = sphi 0, %s137
      %s139 = sphi 0, %s137
      %s140 = sphi 0, %s139
      %s154 = sphi 0, %s140
      %s158 = sphi 0, %s158
      %s160 = sphi 0, %s158
      %s161 = sphi 0, %s160
      %s175 = sphi 0, %s161
      %s181 = sphi 0, %s183
      %s184 = sphi 0, %s181
      %s185 = sphi 0, %s184
      %s201 = sphi 0, %s185
    $region4: #{tpu_custom_call.1} parent=1 // loop_header_branch
      %22 = sbr.rel (%p20) target = $region8
    $region5: #{tpu_custom_call.1} parent=1 // loop_body
      %s24 = ssub.s32 %s19, 1
      %s25 = ssub.s32 %s19, 2
      %s26 = sadd.s32 %s19, 1
      %s27 = ssub.s32 %s19, %s26
      %p28 = scmp.eq.s32.totalorder %s27, 0
      %s30 = sadd.s32 %s29, 1
      %s31 = scalar_select %p28, %s29, %s30
      %p34 = pneg %p28
      %p35 = scmp.eq.s32.totalorder %s19, 3
      %p36 = por %p34, %p35
      %p37 = scmp.ne.s32.totalorder %s29, %s32
      %p38 = scmp.eq.s32.totalorder %s19, 0
      %p39 = por %p37, %p38
      %p40 = scmp.ne.s32.totalorder %s29, %s32
      %p41 = scmp.eq.s32.totalorder %s24, 3
      %p42 = por %p40, %p41
      %p43 = scmp.ne.s32.totalorder %s32, %s33
      %p44 = scmp.eq.s32.totalorder %s24, 0
      %p45 = por %p43, %p44
      %p46 = scmp.ne.s32.totalorder %s32, %s33
      %p47 = scmp.eq.s32.totalorder %s25, 3
      %p48 = por %p46, %p47
      %p50 = scmp.ne.s32.totalorder %s33, %s49
      %p51 = scmp.eq.s32.totalorder %s25, 0
      %p52 = por %p50, %p51
      %s54 = sadd.s32 %s53, 1
      %p57 = scmp.eq.s32.totalorder %s19, 3
      %p58 = scmp.ne.s32.totalorder %s53, %s55
      %p59 = scmp.eq.s32.totalorder %s19, 0
      %p60 = por %p58, %p59
      %p61 = scmp.ne.s32.totalorder %s53, %s55
      %p62 = scmp.eq.s32.totalorder %s24, 3
      %p63 = por %p61, %p62
      %p64 = scmp.ne.s32.totalorder %s55, %s56
      %p65 = scmp.eq.s32.totalorder %s24, 0
      %p66 = por %p64, %p65
      %p67 = scmp.ne.s32.totalorder %s55, %s56
      %p68 = scmp.eq.s32.totalorder %s25, 3
      %p69 = por %p67, %p68
      %p71 = scmp.ne.s32.totalorder %s56, %s70
      %p72 = scmp.eq.s32.totalorder %s25, 0
      %p73 = por %p71, %p72
      %s75 = sadd.s32 %s74, 1
      %p78 = scmp.eq.s32.totalorder %s19, 3
      %p79 = scmp.ne.s32.totalorder %s74, %s76
      %p80 = scmp.eq.s32.totalorder %s19, 0
      %p81 = por %p79, %p80
      %p82 = scmp.ne.s32.totalorder %s74, %s76
      %p83 = scmp.eq.s32.totalorder %s24, 3
      %p84 = por %p82, %p83
      %p85 = scmp.ne.s32.totalorder %s76, %s77
      %p86 = scmp.eq.s32.totalorder %s24, 0
      %p87 = por %p85, %p86
      %p88 = scmp.ne.s32.totalorder %s76, %s77
      %p89 = scmp.eq.s32.totalorder %s25, 3
      %p90 = por %p88, %p89
      %p92 = scmp.ne.s32.totalorder %s77, %s91
      %p93 = scmp.eq.s32.totalorder %s25, 0
      %p94 = por %p92, %p93
      %s96 = sadd.s32 %s95, 1
      %p99 = scmp.eq.s32.totalorder %s19, 3
      %p100 = scmp.ne.s32.totalorder %s95, %s97
      %p101 = scmp.eq.s32.totalorder %s19, 0
      %p102 = por %p100, %p101
      %p103 = scmp.ne.s32.totalorder %s95, %s97
      %p104 = scmp.eq.s32.totalorder %s24, 3
      %p105 = por %p103, %p104
      %p106 = scmp.ne.s32.totalorder %s97, %s98
      %p107 = scmp.eq.s32.totalorder %s24, 0
      %p108 = por %p106, %p107
      %p109 = scmp.ne.s32.totalorder %s97, %s98
      %p110 = scmp.eq.s32.totalorder %s25, 3
      %p111 = por %p109, %p110
      %p113 = scmp.ne.s32.totalorder %s98, %s112
      %p114 = scmp.eq.s32.totalorder %s25, 0
      %p115 = por %p113, %p114
      %s117 = sadd.s32 %s116, 1
      %p120 = scmp.eq.s32.totalorder %s19, 3
      %p121 = scmp.ne.s32.totalorder %s116, %s118
      %p122 = scmp.eq.s32.totalorder %s19, 0
      %p123 = por %p121, %p122
      %p124 = scmp.ne.s32.totalorder %s116, %s118
      %p125 = scmp.eq.s32.totalorder %s24, 3
      %p126 = por %p124, %p125
      %p127 = scmp.ne.s32.totalorder %s118, %s119
      %p128 = scmp.eq.s32.totalorder %s24, 0
      %p129 = por %p127, %p128
      %p130 = scmp.ne.s32.totalorder %s118, %s119
      %p131 = scmp.eq.s32.totalorder %s25, 3
      %p132 = por %p130, %p131
      %p134 = scmp.ne.s32.totalorder %s119, %s133
      %p135 = scmp.eq.s32.totalorder %s25, 0
      %p136 = por %p134, %p135
      %s138 = sadd.s32 %s137, 1
      %p141 = scmp.eq.s32.totalorder %s19, 3
      %p142 = scmp.ne.s32.totalorder %s137, %s139
      %p143 = scmp.eq.s32.totalorder %s19, 0
      %p144 = por %p142, %p143
      %p145 = scmp.ne.s32.totalorder %s137, %s139
      %p146 = scmp.eq.s32.totalorder %s24, 3
      %p147 = por %p145, %p146
      %p148 = scmp.ne.s32.totalorder %s139, %s140
      %p149 = scmp.eq.s32.totalorder %s24, 0
      %p150 = por %p148, %p149
      %p151 = scmp.ne.s32.totalorder %s139, %s140
      %p152 = scmp.eq.s32.totalorder %s25, 3
      %p153 = por %p151, %p152
      %p155 = scmp.ne.s32.totalorder %s140, %s154
      %p156 = scmp.eq.s32.totalorder %s25, 0
      %p157 = por %p155, %p156
      %s159 = sadd.s32 %s158, 1
      %p162 = scmp.eq.s32.totalorder %s19, 3
      %p163 = scmp.ne.s32.totalorder %s158, %s160
      %p164 = scmp.eq.s32.totalorder %s19, 0
      %p165 = por %p163, %p164
      %p166 = scmp.ne.s32.totalorder %s158, %s160
      %p167 = scmp.eq.s32.totalorder %s24, 3
      %p168 = por %p166, %p167
      %p169 = scmp.ne.s32.totalorder %s160, %s161
      %p170 = scmp.eq.s32.totalorder %s24, 0
      %p171 = por %p169, %p170
      %p172 = scmp.ne.s32.totalorder %s160, %s161
      %p173 = scmp.eq.s32.totalorder %s25, 3
      %p174 = por %p172, %p173
      %p176 = scmp.ne.s32.totalorder %s161, %s175
      %p177 = scmp.eq.s32.totalorder %s25, 0
      %p178 = por %p176, %p177
      %s179 = ssub.s32 %s19, %s26
      %p180 = scmp.eq.s32.totalorder %s179, 0
      %s182 = sadd.s32 %s181, 1
      %s183 = scalar_select %p180, %s181, %s182
      %p186 = pneg %p180
      %p187 = scmp.eq.s32.totalorder %s19, 3
      %p188 = por %p186, %p187
      %p189 = scmp.ne.s32.totalorder %s181, %s184
      %p190 = scmp.eq.s32.totalorder %s19, 0
      %p191 = por %p189, %p190
      %p192 = scmp.ne.s32.totalorder %s181, %s184
      %p193 = scmp.eq.s32.totalorder %s24, 3
      %p194 = por %p192, %p193
      %p195 = scmp.ne.s32.totalorder %s184, %s185
      %p196 = scmp.eq.s32.totalorder %s24, 0
      %p197 = por %p195, %p196
      %p198 = scmp.ne.s32.totalorder %s184, %s185
      %p199 = scmp.eq.s32.totalorder %s25, 3
      %p200 = por %p198, %p199
      %p202 = scmp.ne.s32.totalorder %s185, %s201
      %p203 = scmp.eq.s32.totalorder %s25, 0
      %p204 = por %p202, %p203
      %p205 = scmp.le.s32.totalorder 1, %s19
      %p206 = scmp.lt.s32.totalorder %s19, 5
      %p207 = pnand %p205, %p206
      %p208 = pneg %p207
      // Predicated region
      $region9: #{tpu_custom_call.1} parent=5 // pred_check
        _
      $region10: #{tpu_custom_call.1} parent=5 // pred_check_branch
        %210 = sbr.rel (%p207) target = $region12
      $region11: #{tpu_custom_call.1} parent=5 // pred_region
        %s211 = ssub.s32 %s19, 1
        // Predicated region
        $region13: #{tpu_custom_call.1} parent=11 // pred_check
          %p212 = pneg %p66
        $region14: #{tpu_custom_call.1} parent=11 // pred_check_branch
          %214 = sbr.rel (%p212) target = $region16
        $region15: #{tpu_custom_call.1} parent=11 // pred_region
          _
        $region16: #{tpu_custom_call.1} parent=11 // pred_fallthru
          _
        // Predicated region
        $region17: #{tpu_custom_call.1} parent=11 // pred_check
          %p215 = pneg %p87
        $region18: #{tpu_custom_call.1} parent=11 // pred_check_branch
          %217 = sbr.rel (%p215) target = $region20
        $region19: #{tpu_custom_call.1} parent=11 // pred_region
          %s219 = ssub.s32 16, 16
          %220 = vsyncadd [#allocation6], %s219
          %s222 = sshll.u32 [#allocation5], 4
          %s223 = int_to_ptr.vmem [resolvable:$true] %s222
          %225 = dma.hbm_to_vmem [thread:$0]  %s2, 16, %s223, [#allocation6]
        $region20: #{tpu_custom_call.1} parent=11 // pred_fallthru
          _
        // Predicated region
        $region21: #{tpu_custom_call.1} parent=11 // pred_check
          %p226 = pneg %p108
        $region22: #{tpu_custom_call.1} parent=11 // pred_check_branch
          %228 = sbr.rel (%p226) target = $region24
        $region23: #{tpu_custom_call.1} parent=11 // pred_region
          %s230 = ssub.s32 1024, 1024
          %231 = vsyncadd [#allocation6], %s230
          %s232 = sshll.u32 [#allocation7], 4
          %s233 = int_to_ptr.vmem [resolvable:$true] %s232
          %238 = dma.hbm_to_vmem [thread:$0]  %s3, 1024, %s233, [#allocation6], 128, 128, 8
        $region24: #{tpu_custom_call.1} parent=11 // pred_fallthru
          _
        // Predicated region
        $region25: #{tpu_custom_call.1} parent=11 // pred_check
          %p239 = pneg %p129
        $region26: #{tpu_custom_call.1} parent=11 // pred_check_branch
          %241 = sbr.rel (%p239) target = $region28
        $region27: #{tpu_custom_call.1} parent=11 // pred_region
          %s243 = ssub.s32 16, 16
          %244 = vsyncadd [#allocation9], %s243
          %s246 = sshll.u32 [#allocation8], 4
          %s247 = int_to_ptr.vmem [resolvable:$true] %s246
          %249 = dma.hbm_to_vmem [thread:$0]  %s4, 16, %s247, [#allocation9]
        $region28: #{tpu_custom_call.1} parent=11 // pred_fallthru
          _
        // Predicated region
        $region29: #{tpu_custom_call.1} parent=11 // pred_check
          %p250 = pneg %p150
        $region30: #{tpu_custom_call.1} parent=11 // pred_check_branch
          %252 = sbr.rel (%p250) target = $region32
        $region31: #{tpu_custom_call.1} parent=11 // pred_region
          %s254 = ssub.s32 16, 16
          %255 = vsyncadd [#allocation9], %s254
          %s257 = sshll.u32 [#allocation10], 4
          %s258 = int_to_ptr.vmem [resolvable:$true] %s257
          %260 = dma.hbm_to_vmem [thread:$0]  %s5, 16, %s258, [#allocation9]
        $region32: #{tpu_custom_call.1} parent=11 // pred_fallthru
          _
        // Predicated region
        $region33: #{tpu_custom_call.1} parent=11 // pred_check
          %p261 = pneg %p171
        $region34: #{tpu_custom_call.1} parent=11 // pred_check_branch
          %263 = sbr.rel (%p261) target = $region36
        $region35: #{tpu_custom_call.1} parent=11 // pred_region
          _
        $region36: #{tpu_custom_call.1} parent=11 // pred_fallthru
          _
      $region12: #{tpu_custom_call.1} parent=5 // pred_fallthru
        _
      %p264 = scmp.lt.s32.totalorder %s19, 4
      // Predicated region
      $region37: #{tpu_custom_call.1} parent=5 // pred_check
        %p265 = pneg %p264
      $region38: #{tpu_custom_call.1} parent=5 // pred_check_branch
        %267 = sbr.rel (%p265) target = $region40
      $region39: #{tpu_custom_call.1} parent=5 // pred_region
        // Predicated region
        $region41: #{tpu_custom_call.1} parent=39 // pred_check
          %p268 = pneg %p39
        $region42: #{tpu_custom_call.1} parent=39 // pred_check_branch
          %270 = sbr.rel (%p268) target = $region44
        $region43: #{tpu_custom_call.1} parent=39 // pred_region
          %s271 = sand.u32 %s29, 1
          %s272 = scalar_lea.sflag [#allocation4], %s271
          %s273 = sand.u32 %s29, 1
          %s274 = smul.addr %s273, 1024
          %s275 = scalar_lea.vmem [#allocation3], %s274
          %s276 = smul.u32 64, %s19
          %s278 = ssub.s32 16384, 16384
          %279 = vsyncadd %s272, %s278
          %s280 = smul.addr %s276, 2
          %s281 = smul.addr %s280, 128
          %s282 = scalar_lea.hbm %s0, %s281
          %s283 = sshll.u32 %s275, 4
          %s284 = int_to_ptr.vmem [resolvable:$true] %s283
          %289 = dma.hbm_to_vmem [thread:$0]  %s282, 16384, %s284, %s272, 256, 256, 16
        $region44: #{tpu_custom_call.1} parent=39 // pred_fallthru
          _
      $region40: #{tpu_custom_call.1} parent=5 // pred_fallthru
        _
      %p290 = scmp.le.s32.totalorder 1, %s19
      %p291 = scmp.lt.s32.totalorder %s19, 5
      %p292 = pnand %p290, %p291
      %p293 = pneg %p292
      // Predicated region
      $region45: #{tpu_custom_call.1} parent=5 // pred_check
        _
      $region46: #{tpu_custom_call.1} parent=5 // pred_check_branch
        %295 = sbr.rel (%p292) target = $region48
      $region47: #{tpu_custom_call.1} parent=5 // pred_region
        %s296 = ssub.s32 %s19, 1
        %s297 = sand.u32 %s32, 1
        %s298 = scalar_lea.sflag [#allocation4], %s297
        %s299 = sand.u32 %s32, 1
        %s300 = smul.addr %s299, 1024
        %s301 = scalar_lea.vmem [#allocation3], %s300
        // Predicated region
        $region49: #{tpu_custom_call.1} parent=47 // pred_check
          %p302 = pneg %p45
        $region50: #{tpu_custom_call.1} parent=47 // pred_check_branch
          %304 = sbr.rel (%p302) target = $region52
        $region51: #{tpu_custom_call.1} parent=47 // pred_region
          %305 = dma.done %s298, 16384
        $region52: #{tpu_custom_call.1} parent=47 // pred_fallthru
          _
        // Predicated region
        $region53: #{tpu_custom_call.1} parent=47 // pred_check
          %p306 = pneg %p87
        $region54: #{tpu_custom_call.1} parent=47 // pred_check_branch
          %308 = sbr.rel (%p306) target = $region56
        $region55: #{tpu_custom_call.1} parent=47 // pred_region
          %309 = dma.done [#allocation6], 16
        $region56: #{tpu_custom_call.1} parent=47 // pred_fallthru
          _
        // Predicated region
        $region57: #{tpu_custom_call.1} parent=47 // pred_check
          %p310 = pneg %p108
        $region58: #{tpu_custom_call.1} parent=47 // pred_check_branch
          %312 = sbr.rel (%p310) target = $region60
        $region59: #{tpu_custom_call.1} parent=47 // pred_region
          %313 = dma.done [#allocation6], 1024
        $region60: #{tpu_custom_call.1} parent=47 // pred_fallthru
          _
        // Predicated region
        $region61: #{tpu_custom_call.1} parent=47 // pred_check
          %p314 = pneg %p129
        $region62: #{tpu_custom_call.1} parent=47 // pred_check_branch
          %316 = sbr.rel (%p314) target = $region64
        $region63: #{tpu_custom_call.1} parent=47 // pred_region
          %317 = dma.done [#allocation9], 16
        $region64: #{tpu_custom_call.1} parent=47 // pred_fallthru
          _
        // Predicated region
        $region65: #{tpu_custom_call.1} parent=47 // pred_check
          %p318 = pneg %p150
        $region66: #{tpu_custom_call.1} parent=47 // pred_check_branch
          %320 = sbr.rel (%p318) target = $region68
        $region67: #{tpu_custom_call.1} parent=47 // pred_region
          %321 = dma.done [#allocation9], 16
        $region68: #{tpu_custom_call.1} parent=47 // pred_fallthru
          _
        %s322 = sand.u32 %s32, 1
        %s323 = scalar_lea.sflag [#allocation4], %s322
        %s324 = sand.u32 %s32, 1
        %s325 = smul.addr %s324, 1024
        %s326 = scalar_lea.vmem [#allocation3], %s325
        %p327 = pneg %p45
        %p328 = pneg %p42
        %p329 = pneg %p66
        %p330 = pneg %p63
        %p331 = pneg %p87
        %p332 = pneg %p84
        %p333 = pneg %p108
        %p334 = pneg %p105
        %p335 = pneg %p129
        %p336 = pneg %p126
        %p337 = pneg %p150
        %p338 = pneg %p147
        %p339 = pneg %p171
        %p340 = pneg %p168
        %p341 = pneg %p197
        %p342 = pneg %p194
        %s343 = smul.u32 64, %s24
        %p344 = scmp.lt.s32.totalorder %s343, 255
        %s345 = scalar_select %p344, %s343, 255
        %s346 = smul.addr %s345, 8
        %s347 = scalar_lea.vmem %s7, %s346
        %s348 = smul.u32 64, %s24
        %s349 = smul.u32 64, %s24
        %p350 = scmp.lt.s32.totalorder %s349, 255
        %s351 = scalar_select %p350, %s349, 255
        %s352 = smul.addr %s351, 8
        %s353 = scalar_lea.vmem %s7, %s352
        %s354 = smul.u32 64, %s24
        %v355 = vld [vmem:[%s301] sm:$0xff]
        %v356 = vld [vmem:[%s301 + $0x8] sm:$0xff]
        %v357 = vld [vmem:[%s301 + $0x10] sm:$0xff]
        %v358 = vld [vmem:[%s301 + $0x18] sm:$0xff]
        %v359 = vld [vmem:[%s301 + $0x20] sm:$0xff]
        %v360 = vld [vmem:[%s301 + $0x28] sm:$0xff]
        %v361 = vld [vmem:[%s301 + $0x30] sm:$0xff]
        %v362 = vld [vmem:[%s301 + $0x38] sm:$0xff]
        %v363 = vld [vmem:[%s301 + $0x40] sm:$0xff]
        %v364 = vld [vmem:[%s301 + $0x48] sm:$0xff]
        %v365 = vld [vmem:[%s301 + $0x50] sm:$0xff]
        %v366 = vld [vmem:[%s301 + $0x58] sm:$0xff]
        %v367 = vld [vmem:[%s301 + $0x60] sm:$0xff]
        %v368 = vld [vmem:[%s301 + $0x68] sm:$0xff]
        %v369 = vld [vmem:[%s301 + $0x70] sm:$0xff]
        %v370 = vld [vmem:[%s301 + $0x78] sm:$0xff]
        %v371 = vld [vmem:[%s301 + $0x80] sm:$0xff]
        %v372 = vld [vmem:[%s301 + $0x88] sm:$0xff]
        %v373 = vld [vmem:[%s301 + $0x90] sm:$0xff]
        %v374 = vld [vmem:[%s301 + $0x98] sm:$0xff]
        %v375 = vld [vmem:[%s301 + $0xa0] sm:$0xff]
        %v376 = vld [vmem:[%s301 + $0xa8] sm:$0xff]
        %v377 = vld [vmem:[%s301 + $0xb0] sm:$0xff]
        %v378 = vld [vmem:[%s301 + $0xb8] sm:$0xff]
        %v379 = vld [vmem:[%s301 + $0xc0] sm:$0xff]
        %v380 = vld [vmem:[%s301 + $0xc8] sm:$0xff]
        %v381 = vld [vmem:[%s301 + $0xd0] sm:$0xff]
        %v382 = vld [vmem:[%s301 + $0xd8] sm:$0xff]
        %v383 = vld [vmem:[%s301 + $0xe0] sm:$0xff]
        %v384 = vld [vmem:[%s301 + $0xe8] sm:$0xff]
        %v385 = vld [vmem:[%s301 + $0xf0] sm:$0xff]
        %v386 = vld [vmem:[%s301 + $0xf8] sm:$0xff]
        %v387 = vld [vmem:[%s301 + $0x100] sm:$0xff]
        %v388 = vld [vmem:[%s301 + $0x108] sm:$0xff]
        %v389 = vld [vmem:[%s301 + $0x110] sm:$0xff]
        %v390 = vld [vmem:[%s301 + $0x118] sm:$0xff]
        %v391 = vld [vmem:[%s301 + $0x120] sm:$0xff]
        %v392 = vld [vmem:[%s301 + $0x128] sm:$0xff]
        %v393 = vld [vmem:[%s301 + $0x130] sm:$0xff]
        %v394 = vld [vmem:[%s301 + $0x138] sm:$0xff]
        %v395 = vld [vmem:[%s301 + $0x140] sm:$0xff]
        %v396 = vld [vmem:[%s301 + $0x148] sm:$0xff]
        %v397 = vld [vmem:[%s301 + $0x150] sm:$0xff]
        %v398 = vld [vmem:[%s301 + $0x158] sm:$0xff]
        %v399 = vld [vmem:[%s301 + $0x160] sm:$0xff]
        %v400 = vld [vmem:[%s301 + $0x168] sm:$0xff]
        %v401 = vld [vmem:[%s301 + $0x170] sm:$0xff]
        %v402 = vld [vmem:[%s301 + $0x178] sm:$0xff]
        %v403 = vld [vmem:[%s301 + $0x180] sm:$0xff]
        %v404 = vld [vmem:[%s301 + $0x188] sm:$0xff]
        %v405 = vld [vmem:[%s301 + $0x190] sm:$0xff]
        %v406 = vld [vmem:[%s301 + $0x198] sm:$0xff]
        %v407 = vld [vmem:[%s301 + $0x1a0] sm:$0xff]
        %v408 = vld [vmem:[%s301 + $0x1a8] sm:$0xff]
        %v409 = vld [vmem:[%s301 + $0x1b0] sm:$0xff]
        %v410 = vld [vmem:[%s301 + $0x1b8] sm:$0xff]
        %v411 = vld [vmem:[%s301 + $0x1c0] sm:$0xff]
        %v412 = vld [vmem:[%s301 + $0x1c8] sm:$0xff]
        %v413 = vld [vmem:[%s301 + $0x1d0] sm:$0xff]
        %v414 = vld [vmem:[%s301 + $0x1d8] sm:$0xff]
        %v415 = vld [vmem:[%s301 + $0x1e0] sm:$0xff]
        %v416 = vld [vmem:[%s301 + $0x1e8] sm:$0xff]
        %v417 = vld [vmem:[%s301 + $0x1f0] sm:$0xff]
        %v418 = vld [vmem:[%s301 + $0x1f8] sm:$0xff]
        %v419 = vld [vmem:[%s301 + $0x200] sm:$0xff]
        %v420 = vld [vmem:[%s301 + $0x208] sm:$0xff]
        %v421 = vld [vmem:[%s301 + $0x210] sm:$0xff]
        %v422 = vld [vmem:[%s301 + $0x218] sm:$0xff]
        %v423 = vld [vmem:[%s301 + $0x220] sm:$0xff]
        %v424 = vld [vmem:[%s301 + $0x228] sm:$0xff]
        %v425 = vld [vmem:[%s301 + $0x230] sm:$0xff]
        %v426 = vld [vmem:[%s301 + $0x238] sm:$0xff]
        %v427 = vld [vmem:[%s301 + $0x240] sm:$0xff]
        %v428 = vld [vmem:[%s301 + $0x248] sm:$0xff]
        %v429 = vld [vmem:[%s301 + $0x250] sm:$0xff]
        %v430 = vld [vmem:[%s301 + $0x258] sm:$0xff]
        %v431 = vld [vmem:[%s301 + $0x260] sm:$0xff]
        %v432 = vld [vmem:[%s301 + $0x268] sm:$0xff]
        %v433 = vld [vmem:[%s301 + $0x270] sm:$0xff]
        %v434 = vld [vmem:[%s301 + $0x278] sm:$0xff]
        %v435 = vld [vmem:[%s301 + $0x280] sm:$0xff]
        %v436 = vld [vmem:[%s301 + $0x288] sm:$0xff]
        %v437 = vld [vmem:[%s301 + $0x290] sm:$0xff]
        %v438 = vld [vmem:[%s301 + $0x298] sm:$0xff]
        %v439 = vld [vmem:[%s301 + $0x2a0] sm:$0xff]
        %v440 = vld [vmem:[%s301 + $0x2a8] sm:$0xff]
        %v441 = vld [vmem:[%s301 + $0x2b0] sm:$0xff]
        %v442 = vld [vmem:[%s301 + $0x2b8] sm:$0xff]
        %v443 = vld [vmem:[%s301 + $0x2c0] sm:$0xff]
        %v444 = vld [vmem:[%s301 + $0x2c8] sm:$0xff]
        %v445 = vld [vmem:[%s301 + $0x2d0] sm:$0xff]
        %v446 = vld [vmem:[%s301 + $0x2d8] sm:$0xff]
        %v447 = vld [vmem:[%s301 + $0x2e0] sm:$0xff]
        %v448 = vld [vmem:[%s301 + $0x2e8] sm:$0xff]
        %v449 = vld [vmem:[%s301 + $0x2f0] sm:$0xff]
        %v450 = vld [vmem:[%s301 + $0x2f8] sm:$0xff]
        %v451 = vld [vmem:[%s301 + $0x300] sm:$0xff]
        %v452 = vld [vmem:[%s301 + $0x308] sm:$0xff]
        %v453 = vld [vmem:[%s301 + $0x310] sm:$0xff]
        %v454 = vld [vmem:[%s301 + $0x318] sm:$0xff]
        %v455 = vld [vmem:[%s301 + $0x320] sm:$0xff]
        %v456 = vld [vmem:[%s301 + $0x328] sm:$0xff]
        %v457 = vld [vmem:[%s301 + $0x330] sm:$0xff]
        %v458 = vld [vmem:[%s301 + $0x338] sm:$0xff]
        %v459 = vld [vmem:[%s301 + $0x340] sm:$0xff]
        %v460 = vld [vmem:[%s301 + $0x348] sm:$0xff]
        %v461 = vld [vmem:[%s301 + $0x350] sm:$0xff]
        %v462 = vld [vmem:[%s301 + $0x358] sm:$0xff]
        %v463 = vld [vmem:[%s301 + $0x360] sm:$0xff]
        %v464 = vld [vmem:[%s301 + $0x368] sm:$0xff]
        %v465 = vld [vmem:[%s301 + $0x370] sm:$0xff]
        %v466 = vld [vmem:[%s301 + $0x378] sm:$0xff]
        %v467 = vld [vmem:[%s301 + $0x380] sm:$0xff]
        %v468 = vld [vmem:[%s301 + $0x388] sm:$0xff]
        %v469 = vld [vmem:[%s301 + $0x390] sm:$0xff]
        %v470 = vld [vmem:[%s301 + $0x398] sm:$0xff]
        %v471 = vld [vmem:[%s301 + $0x3a0] sm:$0xff]
        %v472 = vld [vmem:[%s301 + $0x3a8] sm:$0xff]
        %v473 = vld [vmem:[%s301 + $0x3b0] sm:$0xff]
        %v474 = vld [vmem:[%s301 + $0x3b8] sm:$0xff]
        %v475 = vld [vmem:[%s301 + $0x3c0] sm:$0xff]
        %v476 = vld [vmem:[%s301 + $0x3c8] sm:$0xff]
        %v477 = vld [vmem:[%s301 + $0x3d0] sm:$0xff]
        %v478 = vld [vmem:[%s301 + $0x3d8] sm:$0xff]
        %v479 = vld [vmem:[%s301 + $0x3e0] sm:$0xff]
        %v480 = vld [vmem:[%s301 + $0x3e8] sm:$0xff]
        %v481 = vld [vmem:[%s301 + $0x3f0] sm:$0xff]
        %v482 = vld [vmem:[%s301 + $0x3f8] sm:$0xff]
        %v483 = vld [vmem:[%s1] sm:$0xff]
        %v484 = vld [vmem:[%s1 + $0x8] sm:$0xff]
        %v485 = vld [vmem:[%s1 + $0x10] sm:$0xff]
        %v486 = vld [vmem:[%s1 + $0x18] sm:$0xff]
        %v487 = vld [vmem:[%s1 + $0x20] sm:$0xff]
        %v488 = vld [vmem:[%s1 + $0x28] sm:$0xff]
        %v489 = vld [vmem:[%s1 + $0x30] sm:$0xff]
        %v490 = vld [vmem:[%s1 + $0x38] sm:$0xff]
        %v491 = vld [vmem:[%s1 + $0x40] sm:$0xff]
        %v492 = vld [vmem:[%s1 + $0x48] sm:$0xff]
        %v493 = vld [vmem:[%s1 + $0x50] sm:$0xff]
        %v494 = vld [vmem:[%s1 + $0x58] sm:$0xff]
        %v495 = vld [vmem:[%s1 + $0x60] sm:$0xff]
        %v496 = vld [vmem:[%s1 + $0x68] sm:$0xff]
        %v497 = vld [vmem:[%s1 + $0x70] sm:$0xff]
        %v498 = vld [vmem:[%s1 + $0x78] sm:$0xff]
        %v499 = vld [vmem:[%s1 + $0x80] sm:$0xff]
        %v500 = vld [vmem:[%s1 + $0x88] sm:$0xff]
        %v501 = vld [vmem:[%s1 + $0x90] sm:$0xff]
        %v502 = vld [vmem:[%s1 + $0x98] sm:$0xff]
        %v503 = vld [vmem:[%s1 + $0xa0] sm:$0xff]
        %v504 = vld [vmem:[%s1 + $0xa8] sm:$0xff]
        %v505 = vld [vmem:[%s1 + $0xb0] sm:$0xff]
        %v506 = vld [vmem:[%s1 + $0xb8] sm:$0xff]
        %v507 = vld [vmem:[%s1 + $0xc0] sm:$0xff]
        %v508 = vld [vmem:[%s1 + $0xc8] sm:$0xff]
        %v509 = vld [vmem:[%s1 + $0xd0] sm:$0xff]
        %v510 = vld [vmem:[%s1 + $0xd8] sm:$0xff]
        %v511 = vld [vmem:[%s1 + $0xe0] sm:$0xff]
        %v512 = vld [vmem:[%s1 + $0xe8] sm:$0xff]
        %v513 = vld [vmem:[%s1 + $0xf0] sm:$0xff]
        %v514 = vld [vmem:[%s1 + $0xf8] sm:$0xff]
        %v515 = vld [vmem:[#allocation5] sm:$0x1]
        %v517 = vlaneseq
        %v518 = vshrl.u32 %v517, 7
        %v519 = vsub.s32 0, %v518
        %v520 = vrot.slane %v515, %v519
        %522 = vmatprep.subr.mxu0 0.0
        %523 = vmatpush1.msra.mxu0 %v483
        %524 = vmatprep.subr.mxu0 0.0
        %525 = vmatpush1.msra.mxu0 %v484
        %526 = vmatprep.subr.mxu0 0.0
        %527 = vmatpush1.msra.mxu0 %v485
        %528 = vmatprep.subr.mxu0 0.0
        %529 = vmatpush1.msra.mxu0 %v486
        %530 = vmatprep.subr.mxu0 0.0
        %531 = vmatpush1.msra.mxu0 %v487
        %532 = vmatprep.subr.mxu0 0.0
        %533 = vmatpush1.msra.mxu0 %v488
        %534 = vmatprep.subr.mxu0 0.0
        %535 = vmatpush1.msra.mxu0 %v489
        %536 = vmatprep.subr.mxu0 0.0
        %537 = vmatpush1.msra.mxu0 %v490
        %538 = vmatprep.subr.mxu0 0.0
        %539 = vmatpush1.msra.mxu0 %v491
        %540 = vmatprep.subr.mxu0 0.0
        %541 = vmatpush1.msra.mxu0 %v492
        %542 = vmatprep.subr.mxu0 0.0
        %543 = vmatpush1.msra.mxu0 %v493
        %544 = vmatprep.subr.mxu0 0.0
        %545 = vmatpush1.msra.mxu0 %v494
        %546 = vmatprep.subr.mxu0 0.0
        %547 = vmatpush1.msra.mxu0 %v495
        %548 = vmatprep.subr.mxu0 0.0
        %549 = vmatpush1.msra.mxu0 %v496
        %550 = vmatprep.subr.mxu0 0.0
        %551 = vmatpush1.msra.mxu0 %v497
        %552 = vmatprep.subr.mxu0 0.0
        %553 = vmatpush1.msra.mxu0 %v498
        %554 = vmatprep.subr.mxu0 0.0
        %555 = vmatpush1.msra.mxu0 %v499
        %556 = vmatprep.subr.mxu0 0.0
        %557 = vmatpush1.msra.mxu0 %v500
        %558 = vmatprep.subr.mxu0 0.0
        %559 = vmatpush1.msra.mxu0 %v501
        %560 = vmatprep.subr.mxu0 0.0
        %561 = vmatpush1.msra.mxu0 %v502
        %562 = vmatprep.subr.mxu0 0.0
        %563 = vmatpush1.msra.mxu0 %v503
        %564 = vmatprep.subr.mxu0 0.0
        %565 = vmatpush1.msra.mxu0 %v504
        %566 = vmatprep.subr.mxu0 0.0
        %567 = vmatpush1.msra.mxu0 %v505
        %568 = vmatprep.subr.mxu0 0.0
        %569 = vmatpush1.msra.mxu0 %v506
        %570 = vmatprep.subr.mxu0 0.0
        %571 = vmatpush1.msra.mxu0 %v507
        %572 = vmatprep.subr.mxu0 0.0
        %573 = vmatpush1.msra.mxu0 %v508
        %574 = vmatprep.subr.mxu0 0.0
        %575 = vmatpush1.msra.mxu0 %v509
        %576 = vmatprep.subr.mxu0 0.0
        %577 = vmatpush1.msra.mxu0 %v510
        %578 = vmatprep.subr.mxu0 0.0
        %579 = vmatpush1.msra.mxu0 %v511
        %580 = vmatprep.subr.mxu0 0.0
        %581 = vmatpush1.msra.mxu0 %v512
        %582 = vmatprep.subr.mxu0 0.0
        %583 = vmatpush1.msra.mxu0 %v513
        %584 = vmatprep.subr.mxu0 0.0
        %585 = vmatpush1.msra.mxu0 %v514
        %586 = vmatprep.mubr.f32.mxu0 %v356
        %587 = vmatmul.mubr.f32.gmra.mrb[0].mxu0 %v355
        %v588 = vpop.f32.mrb[0].mxu0
        %v589 = vadd.f32 %v520, %v588
        %v590 = vpop.f32.mrb[0].mxu0
        %591 = vmatprep.mubr.f32.mxu0 %v358
        %592 = vmatmul.mubr.f32.gmra.mrb[0].mxu0 %v357
        %v593 = vpop.f32.mrb[0].mxu0
        %v594 = vadd.f32 %v520, %v593
        %v595 = vpop.f32.mrb[0].mxu0
        %596 = vmatprep.mubr.f32.mxu0 %v360
        %597 = vmatmul.mubr.f32.gmra.mrb[0].mxu0 %v359
        %v598 = vpop.f32.mrb[0].mxu0
        %v599 = vadd.f32 %v520, %v598
        %v600 = vpop.f32.mrb[0].mxu0
        %601 = vmatprep.mubr.f32.mxu0 %v362
        %602 = vmatmul.mubr.f32.gmra.mrb[0].mxu0 %v361
        %v603 = vpop.f32.mrb[0].mxu0
        %v604 = vadd.f32 %v520, %v603
        %v605 = vpop.f32.mrb[0].mxu0
        %606 = vmatprep.mubr.f32.mxu0 %v364
        %607 = vmatmul.mubr.f32.gmra.mrb[0].mxu0 %v363
        %v608 = vpop.f32.mrb[0].mxu0
        %v609 = vadd.f32 %v520, %v608
        %v610 = vpop.f32.mrb[0].mxu0
        %611 = vmatprep.mubr.f32.mxu0 %v366
        %612 = vmatmul.mubr.f32.gmra.mrb[0].mxu0 %v365
        %v613 = vpop.f32.mrb[0].mxu0
        %v614 = vadd.f32 %v520, %v613
        %v615 = vpop.f32.mrb[0].mxu0
        %616 = vmatprep.mubr.f32.mxu0 %v368
        %617 = vmatmul.mubr.f32.gmra.mrb[0].mxu0 %v367
        %v618 = vpop.f32.mrb[0].mxu0
        %v619 = vadd.f32 %v520, %v618
        %v620 = vpop.f32.mrb[0].mxu0
        %621 = vmatprep.mubr.f32.mxu0 %v370
        %622 = vmatmul.mubr.f32.gmra.mrb[0].mxu0 %v369
        %v623 = vpop.f32.mrb[0].mxu0
        %v624 = vadd.f32 %v520, %v623
        %v625 = vpop.f32.mrb[0].mxu0
        %626 = vmatprep.mubr.f32.mxu0 %v372
        %627 = vmatmul.mubr.f32.gmra.mrb[0].mxu0 %v371
        %v628 = vpop.f32.mrb[0].mxu0
        %v629 = vadd.f32 %v520, %v628
        %v630 = vpop.f32.mrb[0].mxu0
        %631 = vmatprep.mubr.f32.mxu0 %v374
        %632 = vmatmul.mubr.f32.gmra.mrb[0].mxu0 %v373
        %v633 = vpop.f32.mrb[0].mxu0
        %v634 = vadd.f32 %v520, %v633
        %v635 = vpop.f32.mrb[0].mxu0
        %636 = vmatprep.mubr.f32.mxu0 %v376
        %637 = vmatmul.mubr.f32.gmra.mrb[0].mxu0 %v375
        %v638 = vpop.f32.mrb[0].mxu0
        %v639 = vadd.f32 %v520, %v638
        %v640 = vpop.f32.mrb[0].mxu0
        %641 = vmatprep.mubr.f32.mxu0 %v378
        %642 = vmatmul.mubr.f32.gmra.mrb[0].mxu0 %v377
        %v643 = vpop.f32.mrb[0].mxu0
        %v644 = vadd.f32 %v520, %v643
        %v645 = vpop.f32.mrb[0].mxu0
        %646 = vmatprep.mubr.f32.mxu0 %v380
        %647 = vmatmul.mubr.f32.gmra.mrb[0].mxu0 %v379
        %v648 = vpop.f32.mrb[0].mxu0
        %v649 = vadd.f32 %v520, %v648
        %v650 = vpop.f32.mrb[0].mxu0
        %651 = vmatprep.mubr.f32.mxu0 %v382
        %652 = vmatmul.mubr.f32.gmra.mrb[0].mxu0 %v381
        %v653 = vpop.f32.mrb[0].mxu0
        %v654 = vadd.f32 %v520, %v653
        %v655 = vpop.f32.mrb[0].mxu0
        %656 = vmatprep.mubr.f32.mxu0 %v384
        %657 = vmatmul.mubr.f32.gmra.mrb[0].mxu0 %v383
        %v658 = vpop.f32.mrb[0].mxu0
        %v659 = vadd.f32 %v520, %v658
        %v660 = vpop.f32.mrb[0].mxu0
        %661 = vmatprep.mubr.f32.mxu0 %v386
        %662 = vmatmul.mubr.f32.gmra.mrb[0].mxu0 %v385
        %v663 = vpop.f32.mrb[0].mxu0
        %v664 = vadd.f32 %v520, %v663
        %v665 = vpop.f32.mrb[0].mxu0
        %666 = vmatprep.mubr.f32.mxu0 %v388
        %667 = vmatmul.mubr.f32.gmra.mrb[0].mxu0 %v387
        %v668 = vpop.f32.mrb[0].mxu0
        %v669 = vadd.f32 %v520, %v668
        %v670 = vpop.f32.mrb[0].mxu0
        %671 = vmatprep.mubr.f32.mxu0 %v390
        %672 = vmatmul.mubr.f32.gmra.mrb[0].mxu0 %v389
        %v673 = vpop.f32.mrb[0].mxu0
        %v674 = vadd.f32 %v520, %v673
        %v675 = vpop.f32.mrb[0].mxu0
        %676 = vmatprep.mubr.f32.mxu0 %v392
        %677 = vmatmul.mubr.f32.gmra.mrb[0].mxu0 %v391
        %v678 = vpop.f32.mrb[0].mxu0
        %v679 = vadd.f32 %v520, %v678
        %v680 = vpop.f32.mrb[0].mxu0
        %681 = vmatprep.mubr.f32.mxu0 %v394
        %682 = vmatmul.mubr.f32.gmra.mrb[0].mxu0 %v393
        %v683 = vpop.f32.mrb[0].mxu0
        %v684 = vadd.f32 %v520, %v683
        %v685 = vpop.f32.mrb[0].mxu0
        %686 = vmatprep.mubr.f32.mxu0 %v396
        %687 = vmatmul.mubr.f32.gmra.mrb[0].mxu0 %v395
        %v688 = vpop.f32.mrb[0].mxu0
        %v689 = vadd.f32 %v520, %v688
        %v690 = vpop.f32.mrb[0].mxu0
        %691 = vmatprep.mubr.f32.mxu0 %v398
        %692 = vmatmul.mubr.f32.gmra.mrb[0].mxu0 %v397
        %v693 = vpop.f32.mrb[0].mxu0
        %v694 = vadd.f32 %v520, %v693
        %v695 = vpop.f32.mrb[0].mxu0
        %696 = vmatprep.mubr.f32.mxu0 %v400
        %697 = vmatmul.mubr.f32.gmra.mrb[0].mxu0 %v399
        %v698 = vpop.f32.mrb[0].mxu0
        %v699 = vadd.f32 %v520, %v698
        %v700 = vpop.f32.mrb[0].mxu0
        %701 = vmatprep.mubr.f32.mxu0 %v402
        %702 = vmatmul.mubr.f32.gmra.mrb[0].mxu0 %v401
        %v703 = vpop.f32.mrb[0].mxu0
        %v704 = vadd.f32 %v520, %v703
        %v705 = vpop.f32.mrb[0].mxu0
        %706 = vmatprep.mubr.f32.mxu0 %v404
        %707 = vmatmul.mubr.f32.gmra.mrb[0].mxu0 %v403
        %v708 = vpop.f32.mrb[0].mxu0
        %v709 = vadd.f32 %v520, %v708
        %v710 = vpop.f32.mrb[0].mxu0
        %711 = vmatprep.mubr.f32.mxu0 %v406
        %712 = vmatmul.mubr.f32.gmra.mrb[0].mxu0 %v405
        %v713 = vpop.f32.mrb[0].mxu0
        %v714 = vadd.f32 %v520, %v713
        %v715 = vpop.f32.mrb[0].mxu0
        %716 = vmatprep.mubr.f32.mxu0 %v408
        %717 = vmatmul.mubr.f32.gmra.mrb[0].mxu0 %v407
        %v718 = vpop.f32.mrb[0].mxu0
        %v719 = vadd.f32 %v520, %v718
        %v720 = vpop.f32.mrb[0].mxu0
        %721 = vmatprep.mubr.f32.mxu0 %v410
        %722 = vmatmul.mubr.f32.gmra.mrb[0].mxu0 %v409
        %v723 = vpop.f32.mrb[0].mxu0
        %v724 = vadd.f32 %v520, %v723
        %v725 = vpop.f32.mrb[0].mxu0
        %726 = vmatprep.mubr.f32.mxu0 %v412
        %727 = vmatmul.mubr.f32.gmra.mrb[0].mxu0 %v411
        %v728 = vpop.f32.mrb[0].mxu0
        %v729 = vadd.f32 %v520, %v728
        %v730 = vpop.f32.mrb[0].mxu0
        %731 = vmatprep.mubr.f32.mxu0 %v414
        %732 = vmatmul.mubr.f32.gmra.mrb[0].mxu0 %v413
        %v733 = vpop.f32.mrb[0].mxu0
        %v734 = vadd.f32 %v520, %v733
        %v735 = vpop.f32.mrb[0].mxu0
        %736 = vmatprep.mubr.f32.mxu0 %v416
        %737 = vmatmul.mubr.f32.gmra.mrb[0].mxu0 %v415
        %v738 = vpop.f32.mrb[0].mxu0
        %v739 = vadd.f32 %v520, %v738
        %v740 = vpop.f32.mrb[0].mxu0
        %741 = vmatprep.mubr.f32.mxu0 %v418
        %742 = vmatmul.mubr.f32.gmra.mrb[0].mxu0 %v417
        %v743 = vpop.f32.mrb[0].mxu0
        %v744 = vadd.f32 %v520, %v743
        %v745 = vpop.f32.mrb[0].mxu0
        %746 = vmatprep.mubr.f32.mxu0 %v420
        %747 = vmatmul.mubr.f32.gmra.mrb[0].mxu0 %v419
        %v748 = vpop.f32.mrb[0].mxu0
        %v749 = vadd.f32 %v520, %v748
        %v750 = vpop.f32.mrb[0].mxu0
        %751 = vmatprep.mubr.f32.mxu0 %v422
        %752 = vmatmul.mubr.f32.gmra.mrb[0].mxu0 %v421
        %v753 = vpop.f32.mrb[0].mxu0
        %v754 = vadd.f32 %v520, %v753
        %v755 = vpop.f32.mrb[0].mxu0
        %756 = vmatprep.mubr.f32.mxu0 %v424
        %757 = vmatmul.mubr.f32.gmra.mrb[0].mxu0 %v423
        %v758 = vpop.f32.mrb[0].mxu0
        %v759 = vadd.f32 %v520, %v758
        %v760 = vpop.f32.mrb[0].mxu0
        %761 = vmatprep.mubr.f32.mxu0 %v426
        %762 = vmatmul.mubr.f32.gmra.mrb[0].mxu0 %v425
        %v763 = vpop.f32.mrb[0].mxu0
        %v764 = vadd.f32 %v520, %v763
        %v765 = vpop.f32.mrb[0].mxu0
        %766 = vmatprep.mubr.f32.mxu0 %v428
        %767 = vmatmul.mubr.f32.gmra.mrb[0].mxu0 %v427
        %v768 = vpop.f32.mrb[0].mxu0
        %v769 = vadd.f32 %v520, %v768
        %v770 = vpop.f32.mrb[0].mxu0
        %771 = vmatprep.mubr.f32.mxu0 %v430
        %772 = vmatmul.mubr.f32.gmra.mrb[0].mxu0 %v429
        %v773 = vpop.f32.mrb[0].mxu0
        %v774 = vadd.f32 %v520, %v773
        %v775 = vpop.f32.mrb[0].mxu0
        %776 = vmatprep.mubr.f32.mxu0 %v432
        %777 = vmatmul.mubr.f32.gmra.mrb[0].mxu0 %v431
        %v778 = vpop.f32.mrb[0].mxu0
        %v779 = vadd.f32 %v520, %v778
        %v780 = vpop.f32.mrb[0].mxu0
        %781 = vmatprep.mubr.f32.mxu0 %v434
        %782 = vmatmul.mubr.f32.gmra.mrb[0].mxu0 %v433
        %v783 = vpop.f32.mrb[0].mxu0
        %v784 = vadd.f32 %v520, %v783
        %v785 = vpop.f32.mrb[0].mxu0
        %786 = vmatprep.mubr.f32.mxu0 %v436
        %787 = vmatmul.mubr.f32.gmra.mrb[0].mxu0 %v435
        %v788 = vpop.f32.mrb[0].mxu0
        %v789 = vadd.f32 %v520, %v788
        %v790 = vpop.f32.mrb[0].mxu0
        %791 = vmatprep.mubr.f32.mxu0 %v438
        %792 = vmatmul.mubr.f32.gmra.mrb[0].mxu0 %v437
        %v793 = vpop.f32.mrb[0].mxu0
        %v794 = vadd.f32 %v520, %v793
        %v795 = vpop.f32.mrb[0].mxu0
        %796 = vmatprep.mubr.f32.mxu0 %v440
        %797 = vmatmul.mubr.f32.gmra.mrb[0].mxu0 %v439
        %v798 = vpop.f32.mrb[0].mxu0
        %v799 = vadd.f32 %v520, %v798
        %v800 = vpop.f32.mrb[0].mxu0
        %801 = vmatprep.mubr.f32.mxu0 %v442
        %802 = vmatmul.mubr.f32.gmra.mrb[0].mxu0 %v441
        %v803 = vpop.f32.mrb[0].mxu0
        %v804 = vadd.f32 %v520, %v803
        %v805 = vpop.f32.mrb[0].mxu0
        %806 = vmatprep.mubr.f32.mxu0 %v444
        %807 = vmatmul.mubr.f32.gmra.mrb[0].mxu0 %v443
        %v808 = vpop.f32.mrb[0].mxu0
        %v809 = vadd.f32 %v520, %v808
        %v810 = vpop.f32.mrb[0].mxu0
        %811 = vmatprep.mubr.f32.mxu0 %v446
        %812 = vmatmul.mubr.f32.gmra.mrb[0].mxu0 %v445
        %v813 = vpop.f32.mrb[0].mxu0
        %v814 = vadd.f32 %v520, %v813
        %v815 = vpop.f32.mrb[0].mxu0
        %816 = vmatprep.mubr.f32.mxu0 %v448
        %817 = vmatmul.mubr.f32.gmra.mrb[0].mxu0 %v447
        %v818 = vpop.f32.mrb[0].mxu0
        %v819 = vadd.f32 %v520, %v818
        %v820 = vpop.f32.mrb[0].mxu0
        %821 = vmatprep.mubr.f32.mxu0 %v450
        %822 = vmatmul.mubr.f32.gmra.mrb[0].mxu0 %v449
        %v823 = vpop.f32.mrb[0].mxu0
        %v824 = vadd.f32 %v520, %v823
        %v825 = vpop.f32.mrb[0].mxu0
        %826 = vmatprep.mubr.f32.mxu0 %v452
        %827 = vmatmul.mubr.f32.gmra.mrb[0].mxu0 %v451
        %v828 = vpop.f32.mrb[0].mxu0
        %v829 = vadd.f32 %v520, %v828
        %v830 = vpop.f32.mrb[0].mxu0
        %831 = vmatprep.mubr.f32.mxu0 %v454
        %832 = vmatmul.mubr.f32.gmra.mrb[0].mxu0 %v453
        %v833 = vpop.f32.mrb[0].mxu0
        %v834 = vadd.f32 %v520, %v833
        %v835 = vpop.f32.mrb[0].mxu0
        %836 = vmatprep.mubr.f32.mxu0 %v456
        %837 = vmatmul.mubr.f32.gmra.mrb[0].mxu0 %v455
        %v838 = vpop.f32.mrb[0].mxu0
        %v839 = vadd.f32 %v520, %v838
        %v840 = vpop.f32.mrb[0].mxu0
        %841 = vmatprep.mubr.f32.mxu0 %v458
        %842 = vmatmul.mubr.f32.gmra.mrb[0].mxu0 %v457
        %v843 = vpop.f32.mrb[0].mxu0
        %v844 = vadd.f32 %v520, %v843
        %v845 = vpop.f32.mrb[0].mxu0
        %846 = vmatprep.mubr.f32.mxu0 %v460
        %847 = vmatmul.mubr.f32.gmra.mrb[0].mxu0 %v459
        %v848 = vpop.f32.mrb[0].mxu0
        %v849 = vadd.f32 %v520, %v848
        %v850 = vpop.f32.mrb[0].mxu0
        %851 = vmatprep.mubr.f32.mxu0 %v462
        %852 = vmatmul.mubr.f32.gmra.mrb[0].mxu0 %v461
        %v853 = vpop.f32.mrb[0].mxu0
        %v854 = vadd.f32 %v520, %v853
        %v855 = vpop.f32.mrb[0].mxu0
        %856 = vmatprep.mubr.f32.mxu0 %v464
        %857 = vmatmul.mubr.f32.gmra.mrb[0].mxu0 %v463
        %v858 = vpop.f32.mrb[0].mxu0
        %v859 = vadd.f32 %v520, %v858
        %v860 = vpop.f32.mrb[0].mxu0
        %861 = vmatprep.mubr.f32.mxu0 %v466
        %862 = vmatmul.mubr.f32.gmra.mrb[0].mxu0 %v465
        %v863 = vpop.f32.mrb[0].mxu0
        %v864 = vadd.f32 %v520, %v863
        %v865 = vpop.f32.mrb[0].mxu0
        %866 = vmatprep.mubr.f32.mxu0 %v468
        %867 = vmatmul.mubr.f32.gmra.mrb[0].mxu0 %v467
        %v868 = vpop.f32.mrb[0].mxu0
        %v869 = vadd.f32 %v520, %v868
        %v870 = vpop.f32.mrb[0].mxu0
        %871 = vmatprep.mubr.f32.mxu0 %v470
        %872 = vmatmul.mubr.f32.gmra.mrb[0].mxu0 %v469
        %v873 = vpop.f32.mrb[0].mxu0
        %v874 = vadd.f32 %v520, %v873
        %v875 = vpop.f32.mrb[0].mxu0
        %876 = vmatprep.mubr.f32.mxu0 %v472
        %877 = vmatmul.mubr.f32.gmra.mrb[0].mxu0 %v471
        %v878 = vpop.f32.mrb[0].mxu0
        %v879 = vadd.f32 %v520, %v878
        %v880 = vpop.f32.mrb[0].mxu0
        %881 = vmatprep.mubr.f32.mxu0 %v474
        %882 = vmatmul.mubr.f32.gmra.mrb[0].mxu0 %v473
        %v883 = vpop.f32.mrb[0].mxu0
        %v884 = vadd.f32 %v520, %v883
        %v885 = vpop.f32.mrb[0].mxu0
        %886 = vmatprep.mubr.f32.mxu0 %v476
        %887 = vmatmul.mubr.f32.gmra.mrb[0].mxu0 %v475
        %v888 = vpop.f32.mrb[0].mxu0
        %v889 = vadd.f32 %v520, %v888
        %v890 = vpop.f32.mrb[0].mxu0
        %891 = vmatprep.mubr.f32.mxu0 %v478
        %892 = vmatmul.mubr.f32.gmra.mrb[0].mxu0 %v477
        %v893 = vpop.f32.mrb[0].mxu0
        %v894 = vadd.f32 %v520, %v893
        %v895 = vpop.f32.mrb[0].mxu0
        %896 = vmatprep.mubr.f32.mxu0 %v480
        %897 = vmatmul.mubr.f32.gmra.mrb[0].mxu0 %v479
        %v898 = vpop.f32.mrb[0].mxu0
        %v899 = vadd.f32 %v520, %v898
        %v900 = vpop.f32.mrb[0].mxu0
        %901 = vmatprep.mubr.f32.mxu0 %v482
        %902 = vmatmul.mubr.f32.gmra.mrb[0].mxu0 %v481
        %v903 = vpop.f32.mrb[0].mxu0
        %v904 = vadd.f32 %v520, %v903
        %v905 = vpop.f32.mrb[0].mxu0
        %906 = vdwg.mxu0
        %v907 = vmax.f32 %v589, 0.0
        %v908 = vmax.f32 %v594, 0.0
        %v909 = vmax.f32 %v599, 0.0
        %v910 = vmax.f32 %v604, 0.0
        %v911 = vmax.f32 %v609, 0.0
        %v912 = vmax.f32 %v614, 0.0
        %v913 = vmax.f32 %v619, 0.0
        %v914 = vmax.f32 %v624, 0.0
        %v915 = vmax.f32 %v629, 0.0
        %v916 = vmax.f32 %v634, 0.0
        %v917 = vmax.f32 %v639, 0.0
        %v918 = vmax.f32 %v644, 0.0
        %v919 = vmax.f32 %v649, 0.0
        %v920 = vmax.f32 %v654, 0.0
        %v921 = vmax.f32 %v659, 0.0
        %v922 = vmax.f32 %v664, 0.0
        %v923 = vmax.f32 %v669, 0.0
        %v924 = vmax.f32 %v674, 0.0
        %v925 = vmax.f32 %v679, 0.0
        %v926 = vmax.f32 %v684, 0.0
        %v927 = vmax.f32 %v689, 0.0
        %v928 = vmax.f32 %v694, 0.0
        %v929 = vmax.f32 %v699, 0.0
        %v930 = vmax.f32 %v704, 0.0
        %v931 = vmax.f32 %v709, 0.0
        %v932 = vmax.f32 %v714, 0.0
        %v933 = vmax.f32 %v719, 0.0
        %v934 = vmax.f32 %v724, 0.0
        %v935 = vmax.f32 %v729, 0.0
        %v936 = vmax.f32 %v734, 0.0
        %v937 = vmax.f32 %v739, 0.0
        %v938 = vmax.f32 %v744, 0.0
        %v939 = vmax.f32 %v749, 0.0
        %v940 = vmax.f32 %v754, 0.0
        %v941 = vmax.f32 %v759, 0.0
        %v942 = vmax.f32 %v764, 0.0
        %v943 = vmax.f32 %v769, 0.0
        %v944 = vmax.f32 %v774, 0.0
        %v945 = vmax.f32 %v779, 0.0
        %v946 = vmax.f32 %v784, 0.0
        %v947 = vmax.f32 %v789, 0.0
        %v948 = vmax.f32 %v794, 0.0
        %v949 = vmax.f32 %v799, 0.0
        %v950 = vmax.f32 %v804, 0.0
        %v951 = vmax.f32 %v809, 0.0
        %v952 = vmax.f32 %v814, 0.0
        %v953 = vmax.f32 %v819, 0.0
        %v954 = vmax.f32 %v824, 0.0
        %v955 = vmax.f32 %v829, 0.0
        %v956 = vmax.f32 %v834, 0.0
        %v957 = vmax.f32 %v839, 0.0
        %v958 = vmax.f32 %v844, 0.0
        %v959 = vmax.f32 %v849, 0.0
        %v960 = vmax.f32 %v854, 0.0
        %v961 = vmax.f32 %v859, 0.0
        %v962 = vmax.f32 %v864, 0.0
        %v963 = vmax.f32 %v869, 0.0
        %v964 = vmax.f32 %v874, 0.0
        %v965 = vmax.f32 %v879, 0.0
        %v966 = vmax.f32 %v884, 0.0
        %v967 = vmax.f32 %v889, 0.0
        %v968 = vmax.f32 %v894, 0.0
        %v969 = vmax.f32 %v899, 0.0
        %v970 = vmax.f32 %v904, 0.0
        %v971 = vld [vmem:[#allocation7] sm:$0xff]
        %v972 = vld [vmem:[#allocation7 + $0x8] sm:$0xff]
        %v973 = vld [vmem:[#allocation7 + $0x10] sm:$0xff]
        %v974 = vld [vmem:[#allocation7 + $0x18] sm:$0xff]
        %v975 = vld [vmem:[#allocation7 + $0x20] sm:$0xff]
        %v976 = vld [vmem:[#allocation7 + $0x28] sm:$0xff]
        %v977 = vld [vmem:[#allocation7 + $0x30] sm:$0xff]
        %v978 = vld [vmem:[#allocation7 + $0x38] sm:$0xff]
        %v979 = vld [vmem:[#allocation8] sm:$0x1]
        %v981 = vlaneseq
        %v982 = vshrl.u32 %v981, 7
        %v983 = vsub.s32 0, %v982
        %v984 = vrot.slane %v979, %v983
        %vm986 = vcmask 523264
        %v988 = vsel %vm986, %v907, 0
        %v991 = vsel %vm986, %v908, 0
        %v994 = vsel %vm986, %v909, 0
        %v997 = vsel %vm986, %v910, 0
        %v1000 = vsel %vm986, %v911, 0
        %v1003 = vsel %vm986, %v912, 0
        %v1006 = vsel %vm986, %v913, 0
        %v1009 = vsel %vm986, %v914, 0
        %v1012 = vsel %vm986, %v915, 0
        %v1015 = vsel %vm986, %v916, 0
        %v1018 = vsel %vm986, %v917, 0
        %v1021 = vsel %vm986, %v918, 0
        %v1024 = vsel %vm986, %v919, 0
        %v1027 = vsel %vm986, %v920, 0
        %v1030 = vsel %vm986, %v921, 0
        %v1033 = vsel %vm986, %v922, 0
        %v1036 = vsel %vm986, %v923, 0
        %v1039 = vsel %vm986, %v924, 0
        %v1042 = vsel %vm986, %v925, 0
        %v1045 = vsel %vm986, %v926, 0
        %v1048 = vsel %vm986, %v927, 0
        %v1051 = vsel %vm986, %v928, 0
        %v1054 = vsel %vm986, %v929, 0
        %v1057 = vsel %vm986, %v930, 0
        %v1060 = vsel %vm986, %v931, 0
        %v1063 = vsel %vm986, %v932, 0
        %v1066 = vsel %vm986, %v933, 0
        %v1069 = vsel %vm986, %v934, 0
        %v1072 = vsel %vm986, %v935, 0
        %v1075 = vsel %vm986, %v936, 0
        %v1078 = vsel %vm986, %v937, 0
        %v1081 = vsel %vm986, %v938, 0
        %v1084 = vsel %vm986, %v939, 0
        %v1087 = vsel %vm986, %v940, 0
        %v1090 = vsel %vm986, %v941, 0
        %v1093 = vsel %vm986, %v942, 0
        %v1096 = vsel %vm986, %v943, 0
        %v1099 = vsel %vm986, %v944, 0
        %v1102 = vsel %vm986, %v945, 0
        %v1105 = vsel %vm986, %v946, 0
        %v1108 = vsel %vm986, %v947, 0
        %v1111 = vsel %vm986, %v948, 0
        %v1114 = vsel %vm986, %v949, 0
        %v1117 = vsel %vm986, %v950, 0
        %v1120 = vsel %vm986, %v951, 0
        %v1123 = vsel %vm986, %v952, 0
        %v1126 = vsel %vm986, %v953, 0
        %v1129 = vsel %vm986, %v954, 0
        %v1132 = vsel %vm986, %v955, 0
        %v1135 = vsel %vm986, %v956, 0
        %v1138 = vsel %vm986, %v957, 0
        %v1141 = vsel %vm986, %v958, 0
        %v1144 = vsel %vm986, %v959, 0
        %v1147 = vsel %vm986, %v960, 0
        %v1150 = vsel %vm986, %v961, 0
        %v1153 = vsel %vm986, %v962, 0
        %v1156 = vsel %vm986, %v963, 0
        %v1159 = vsel %vm986, %v964, 0
        %v1162 = vsel %vm986, %v965, 0
        %v1165 = vsel %vm986, %v966, 0
        %v1168 = vsel %vm986, %v967, 0
        %v1171 = vsel %vm986, %v968, 0
        %v1174 = vsel %vm986, %v969, 0
        %v1177 = vsel %vm986, %v970, 0
        %1179 = vmatprep.subr.mxu0 0.0
        %1180 = vmatpush1.msra.mxu0 %v971
        %1181 = vmatprep.subr.mxu0 0.0
        %1182 = vmatpush1.msra.mxu0 %v972
        %1183 = vmatprep.subr.mxu0 0.0
        %1184 = vmatpush1.msra.mxu0 %v973
        %1185 = vmatprep.subr.mxu0 0.0
        %1186 = vmatpush1.msra.mxu0 %v974
        %1187 = vmatprep.subr.mxu0 0.0
        %1188 = vmatpush1.msra.mxu0 %v975
        %1189 = vmatprep.subr.mxu0 0.0
        %1190 = vmatpush1.msra.mxu0 %v976
        %1191 = vmatprep.subr.mxu0 0.0
        %1192 = vmatpush1.msra.mxu0 %v977
        %1193 = vmatprep.subr.mxu0 0.0
        %1194 = vmatpush1.msra.mxu0 %v978
        %1195 = vmatprep.subr.mxu0 0.0
        %1196 = vmatpush1.msra.mxu0 0.0
        %1197 = vmatprep.subr.mxu0 0.0
        %1198 = vmatpush1.msra.mxu0 0.0
        %1199 = vmatprep.subr.mxu0 0.0
        %1200 = vmatpush1.msra.mxu0 0.0
        %1201 = vmatprep.subr.mxu0 0.0
        %1202 = vmatpush1.msra.mxu0 0.0
        %1203 = vmatprep.subr.mxu0 0.0
        %1204 = vmatpush1.msra.mxu0 0.0
        %1205 = vmatprep.subr.mxu0 0.0
        %1206 = vmatpush1.msra.mxu0 0.0
        %1207 = vmatprep.subr.mxu0 0.0
        %1208 = vmatpush1.msra.mxu0 0.0
        %1209 = vmatprep.subr.mxu0 0.0
        %1210 = vmatpush1.msra.mxu0 0.0
        %1211 = vmatprep.subr.mxu0 0.0
        %1212 = vmatpush1.msra.mxu0 0.0
        %1213 = vmatprep.subr.mxu0 0.0
        %1214 = vmatpush1.msra.mxu0 0.0
        %1215 = vmatprep.subr.mxu0 0.0
        %1216 = vmatpush1.msra.mxu0 0.0
        %1217 = vmatprep.subr.mxu0 0.0
        %1218 = vmatpush1.msra.mxu0 0.0
        %1219 = vmatprep.subr.mxu0 0.0
        %1220 = vmatpush1.msra.mxu0 0.0
        %1221 = vmatprep.subr.mxu0 0.0
        %1222 = vmatpush1.msra.mxu0 0.0
        %1223 = vmatprep.subr.mxu0 0.0
        %1224 = vmatpush1.msra.mxu0 0.0
        %1225 = vmatprep.subr.mxu0 0.0
        %1226 = vmatpush1.msra.mxu0 0.0
        %1227 = vmatprep.subr.mxu0 0.0
        %1228 = vmatpush1.msra.mxu0 0.0
        %1229 = vmatprep.subr.mxu0 0.0
        %1230 = vmatpush1.msra.mxu0 0.0
        %1231 = vmatprep.subr.mxu0 0.0
        %1232 = vmatpush1.msra.mxu0 0.0
        %1233 = vmatprep.subr.mxu0 0.0
        %1234 = vmatpush1.msra.mxu0 0.0
        %1235 = vmatprep.subr.mxu0 0.0
        %1236 = vmatpush1.msra.mxu0 0.0
        %1237 = vmatprep.subr.mxu0 0.0
        %1238 = vmatpush1.msra.mxu0 0.0
        %1239 = vmatprep.subr.mxu0 0.0
        %1240 = vmatpush1.msra.mxu0 0.0
        %1241 = vmatprep.subr.mxu0 0.0
        %1242 = vmatpush1.msra.mxu0 0.0
        %1243 = vmatprep.mubr.f32.mxu0 0.0
        %1244 = vmatmul.mubr.f32.gmra.mrb[0].mxu0 %v988
        %v1245 = vpop.f32.mrb[0].mxu0
        %v1246 = vadd.f32 %v984, %v1245
        %v1247 = vpop.f32.mrb[0].mxu0
        %1248 = vmatprep.mubr.f32.mxu0 0.0
        %1249 = vmatmul.mubr.f32.gmra.mrb[0].mxu0 %v991
        %v1250 = vpop.f32.mrb[0].mxu0
        %v1251 = vadd.f32 %v984, %v1250
        %v1252 = vpop.f32.mrb[0].mxu0
        %1253 = vmatprep.mubr.f32.mxu0 0.0
        %1254 = vmatmul.mubr.f32.gmra.mrb[0].mxu0 %v994
        %v1255 = vpop.f32.mrb[0].mxu0
        %v1256 = vadd.f32 %v984, %v1255
        %v1257 = vpop.f32.mrb[0].mxu0
        %1258 = vmatprep.mubr.f32.mxu0 0.0
        %1259 = vmatmul.mubr.f32.gmra.mrb[0].mxu0 %v997
        %v1260 = vpop.f32.mrb[0].mxu0
        %v1261 = vadd.f32 %v984, %v1260
        %v1262 = vpop.f32.mrb[0].mxu0
        %1263 = vmatprep.mubr.f32.mxu0 0.0
        %1264 = vmatmul.mubr.f32.gmra.mrb[0].mxu0 %v1000
        %v1265 = vpop.f32.mrb[0].mxu0
        %v1266 = vadd.f32 %v984, %v1265
        %v1267 = vpop.f32.mrb[0].mxu0
        %1268 = vmatprep.mubr.f32.mxu0 0.0
        %1269 = vmatmul.mubr.f32.gmra.mrb[0].mxu0 %v1003
        %v1270 = vpop.f32.mrb[0].mxu0
        %v1271 = vadd.f32 %v984, %v1270
        %v1272 = vpop.f32.mrb[0].mxu0
        %1273 = vmatprep.mubr.f32.mxu0 0.0
        %1274 = vmatmul.mubr.f32.gmra.mrb[0].mxu0 %v1006
        %v1275 = vpop.f32.mrb[0].mxu0
        %v1276 = vadd.f32 %v984, %v1275
        %v1277 = vpop.f32.mrb[0].mxu0
        %1278 = vmatprep.mubr.f32.mxu0 0.0
        %1279 = vmatmul.mubr.f32.gmra.mrb[0].mxu0 %v1009
        %v1280 = vpop.f32.mrb[0].mxu0
        %v1281 = vadd.f32 %v984, %v1280
        %v1282 = vpop.f32.mrb[0].mxu0
        %1283 = vmatprep.mubr.f32.mxu0 0.0
        %1284 = vmatmul.mubr.f32.gmra.mrb[0].mxu0 %v1012
        %v1285 = vpop.f32.mrb[0].mxu0
        %v1286 = vadd.f32 %v984, %v1285
        %v1287 = vpop.f32.mrb[0].mxu0
        %1288 = vmatprep.mubr.f32.mxu0 0.0
        %1289 = vmatmul.mubr.f32.gmra.mrb[0].mxu0 %v1015
        %v1290 = vpop.f32.mrb[0].mxu0
        %v1291 = vadd.f32 %v984, %v1290
        %v1292 = vpop.f32.mrb[0].mxu0
        %1293 = vmatprep.mubr.f32.mxu0 0.0
        %1294 = vmatmul.mubr.f32.gmra.mrb[0].mxu0 %v1018
        %v1295 = vpop.f32.mrb[0].mxu0
        %v1296 = vadd.f32 %v984, %v1295
        %v1297 = vpop.f32.mrb[0].mxu0
        %1298 = vmatprep.mubr.f32.mxu0 0.0
        %1299 = vmatmul.mubr.f32.gmra.mrb[0].mxu0 %v1021
        %v1300 = vpop.f32.mrb[0].mxu0
        %v1301 = vadd.f32 %v984, %v1300
        %v1302 = vpop.f32.mrb[0].mxu0
        %1303 = vmatprep.mubr.f32.mxu0 0.0
        %1304 = vmatmul.mubr.f32.gmra.mrb[0].mxu0 %v1024
        %v1305 = vpop.f32.mrb[0].mxu0
        %v1306 = vadd.f32 %v984, %v1305
        %v1307 = vpop.f32.mrb[0].mxu0
        %1308 = vmatprep.mubr.f32.mxu0 0.0
        %1309 = vmatmul.mubr.f32.gmra.mrb[0].mxu0 %v1027
        %v1310 = vpop.f32.mrb[0].mxu0
        %v1311 = vadd.f32 %v984, %v1310
        %v1312 = vpop.f32.mrb[0].mxu0
        %1313 = vmatprep.mubr.f32.mxu0 0.0
        %1314 = vmatmul.mubr.f32.gmra.mrb[0].mxu0 %v1030
        %v1315 = vpop.f32.mrb[0].mxu0
        %v1316 = vadd.f32 %v984, %v1315
        %v1317 = vpop.f32.mrb[0].mxu0
        %1318 = vmatprep.mubr.f32.mxu0 0.0
        %1319 = vmatmul.mubr.f32.gmra.mrb[0].mxu0 %v1033
        %v1320 = vpop.f32.mrb[0].mxu0
        %v1321 = vadd.f32 %v984, %v1320
        %v1322 = vpop.f32.mrb[0].mxu0
        %1323 = vmatprep.mubr.f32.mxu0 0.0
        %1324 = vmatmul.mubr.f32.gmra.mrb[0].mxu0 %v1036
        %v1325 = vpop.f32.mrb[0].mxu0
        %v1326 = vadd.f32 %v984, %v1325
        %v1327 = vpop.f32.mrb[0].mxu0
        %1328 = vmatprep.mubr.f32.mxu0 0.0
        %1329 = vmatmul.mubr.f32.gmra.mrb[0].mxu0 %v1039
        %v1330 = vpop.f32.mrb[0].mxu0
        %v1331 = vadd.f32 %v984, %v1330
        %v1332 = vpop.f32.mrb[0].mxu0
        %1333 = vmatprep.mubr.f32.mxu0 0.0
        %1334 = vmatmul.mubr.f32.gmra.mrb[0].mxu0 %v1042
        %v1335 = vpop.f32.mrb[0].mxu0
        %v1336 = vadd.f32 %v984, %v1335
        %v1337 = vpop.f32.mrb[0].mxu0
        %1338 = vmatprep.mubr.f32.mxu0 0.0
        %1339 = vmatmul.mubr.f32.gmra.mrb[0].mxu0 %v1045
        %v1340 = vpop.f32.mrb[0].mxu0
        %v1341 = vadd.f32 %v984, %v1340
        %v1342 = vpop.f32.mrb[0].mxu0
        %1343 = vmatprep.mubr.f32.mxu0 0.0
        %1344 = vmatmul.mubr.f32.gmra.mrb[0].mxu0 %v1048
        %v1345 = vpop.f32.mrb[0].mxu0
        %v1346 = vadd.f32 %v984, %v1345
        %v1347 = vpop.f32.mrb[0].mxu0
        %1348 = vmatprep.mubr.f32.mxu0 0.0
        %1349 = vmatmul.mubr.f32.gmra.mrb[0].mxu0 %v1051
        %v1350 = vpop.f32.mrb[0].mxu0
        %v1351 = vadd.f32 %v984, %v1350
        %v1352 = vpop.f32.mrb[0].mxu0
        %1353 = vmatprep.mubr.f32.mxu0 0.0
        %1354 = vmatmul.mubr.f32.gmra.mrb[0].mxu0 %v1054
        %v1355 = vpop.f32.mrb[0].mxu0
        %v1356 = vadd.f32 %v984, %v1355
        %v1357 = vpop.f32.mrb[0].mxu0
        %1358 = vmatprep.mubr.f32.mxu0 0.0
        %1359 = vmatmul.mubr.f32.gmra.mrb[0].mxu0 %v1057
        %v1360 = vpop.f32.mrb[0].mxu0
        %v1361 = vadd.f32 %v984, %v1360
        %v1362 = vpop.f32.mrb[0].mxu0
        %1363 = vmatprep.mubr.f32.mxu0 0.0
        %1364 = vmatmul.mubr.f32.gmra.mrb[0].mxu0 %v1060
        %v1365 = vpop.f32.mrb[0].mxu0
        %v1366 = vadd.f32 %v984, %v1365
        %v1367 = vpop.f32.mrb[0].mxu0
        %1368 = vmatprep.mubr.f32.mxu0 0.0
        %1369 = vmatmul.mubr.f32.gmra.mrb[0].mxu0 %v1063
        %v1370 = vpop.f32.mrb[0].mxu0
        %v1371 = vadd.f32 %v984, %v1370
        %v1372 = vpop.f32.mrb[0].mxu0
        %1373 = vmatprep.mubr.f32.mxu0 0.0
        %1374 = vmatmul.mubr.f32.gmra.mrb[0].mxu0 %v1066
        %v1375 = vpop.f32.mrb[0].mxu0
        %v1376 = vadd.f32 %v984, %v1375
        %v1377 = vpop.f32.mrb[0].mxu0
        %1378 = vmatprep.mubr.f32.mxu0 0.0
        %1379 = vmatmul.mubr.f32.gmra.mrb[0].mxu0 %v1069
        %v1380 = vpop.f32.mrb[0].mxu0
        %v1381 = vadd.f32 %v984, %v1380
        %v1382 = vpop.f32.mrb[0].mxu0
        %1383 = vmatprep.mubr.f32.mxu0 0.0
        %1384 = vmatmul.mubr.f32.gmra.mrb[0].mxu0 %v1072
        %v1385 = vpop.f32.mrb[0].mxu0
        %v1386 = vadd.f32 %v984, %v1385
        %v1387 = vpop.f32.mrb[0].mxu0
        %1388 = vmatprep.mubr.f32.mxu0 0.0
        %1389 = vmatmul.mubr.f32.gmra.mrb[0].mxu0 %v1075
        %v1390 = vpop.f32.mrb[0].mxu0
        %v1391 = vadd.f32 %v984, %v1390
        %v1392 = vpop.f32.mrb[0].mxu0
        %1393 = vmatprep.mubr.f32.mxu0 0.0
        %1394 = vmatmul.mubr.f32.gmra.mrb[0].mxu0 %v1078
        %v1395 = vpop.f32.mrb[0].mxu0
        %v1396 = vadd.f32 %v984, %v1395
        %v1397 = vpop.f32.mrb[0].mxu0
        %1398 = vmatprep.mubr.f32.mxu0 0.0
        %1399 = vmatmul.mubr.f32.gmra.mrb[0].mxu0 %v1081
        %v1400 = vpop.f32.mrb[0].mxu0
        %v1401 = vadd.f32 %v984, %v1400
        %v1402 = vpop.f32.mrb[0].mxu0
        %1403 = vmatprep.mubr.f32.mxu0 0.0
        %1404 = vmatmul.mubr.f32.gmra.mrb[0].mxu0 %v1084
        %v1405 = vpop.f32.mrb[0].mxu0
        %v1406 = vadd.f32 %v984, %v1405
        %v1407 = vpop.f32.mrb[0].mxu0
        %1408 = vmatprep.mubr.f32.mxu0 0.0
        %1409 = vmatmul.mubr.f32.gmra.mrb[0].mxu0 %v1087
        %v1410 = vpop.f32.mrb[0].mxu0
        %v1411 = vadd.f32 %v984, %v1410
        %v1412 = vpop.f32.mrb[0].mxu0
        %1413 = vmatprep.mubr.f32.mxu0 0.0
        %1414 = vmatmul.mubr.f32.gmra.mrb[0].mxu0 %v1090
        %v1415 = vpop.f32.mrb[0].mxu0
        %v1416 = vadd.f32 %v984, %v1415
        %v1417 = vpop.f32.mrb[0].mxu0
        %1418 = vmatprep.mubr.f32.mxu0 0.0
        %1419 = vmatmul.mubr.f32.gmra.mrb[0].mxu0 %v1093
        %v1420 = vpop.f32.mrb[0].mxu0
        %v1421 = vadd.f32 %v984, %v1420
        %v1422 = vpop.f32.mrb[0].mxu0
        %1423 = vmatprep.mubr.f32.mxu0 0.0
        %1424 = vmatmul.mubr.f32.gmra.mrb[0].mxu0 %v1096
        %v1425 = vpop.f32.mrb[0].mxu0
        %v1426 = vadd.f32 %v984, %v1425
        %v1427 = vpop.f32.mrb[0].mxu0
        %1428 = vmatprep.mubr.f32.mxu0 0.0
        %1429 = vmatmul.mubr.f32.gmra.mrb[0].mxu0 %v1099
        %v1430 = vpop.f32.mrb[0].mxu0
        %v1431 = vadd.f32 %v984, %v1430
        %v1432 = vpop.f32.mrb[0].mxu0
        %1433 = vmatprep.mubr.f32.mxu0 0.0
        %1434 = vmatmul.mubr.f32.gmra.mrb[0].mxu0 %v1102
        %v1435 = vpop.f32.mrb[0].mxu0
        %v1436 = vadd.f32 %v984, %v1435
        %v1437 = vpop.f32.mrb[0].mxu0
        %1438 = vmatprep.mubr.f32.mxu0 0.0
        %1439 = vmatmul.mubr.f32.gmra.mrb[0].mxu0 %v1105
        %v1440 = vpop.f32.mrb[0].mxu0
        %v1441 = vadd.f32 %v984, %v1440
        %v1442 = vpop.f32.mrb[0].mxu0
        %1443 = vmatprep.mubr.f32.mxu0 0.0
        %1444 = vmatmul.mubr.f32.gmra.mrb[0].mxu0 %v1108
        %v1445 = vpop.f32.mrb[0].mxu0
        %v1446 = vadd.f32 %v984, %v1445
        %v1447 = vpop.f32.mrb[0].mxu0
        %1448 = vmatprep.mubr.f32.mxu0 0.0
        %1449 = vmatmul.mubr.f32.gmra.mrb[0].mxu0 %v1111
        %v1450 = vpop.f32.mrb[0].mxu0
        %v1451 = vadd.f32 %v984, %v1450
        %v1452 = vpop.f32.mrb[0].mxu0
        %1453 = vmatprep.mubr.f32.mxu0 0.0
        %1454 = vmatmul.mubr.f32.gmra.mrb[0].mxu0 %v1114
        %v1455 = vpop.f32.mrb[0].mxu0
        %v1456 = vadd.f32 %v984, %v1455
        %v1457 = vpop.f32.mrb[0].mxu0
        %1458 = vmatprep.mubr.f32.mxu0 0.0
        %1459 = vmatmul.mubr.f32.gmra.mrb[0].mxu0 %v1117
        %v1460 = vpop.f32.mrb[0].mxu0
        %v1461 = vadd.f32 %v984, %v1460
        %v1462 = vpop.f32.mrb[0].mxu0
        %1463 = vmatprep.mubr.f32.mxu0 0.0
        %1464 = vmatmul.mubr.f32.gmra.mrb[0].mxu0 %v1120
        %v1465 = vpop.f32.mrb[0].mxu0
        %v1466 = vadd.f32 %v984, %v1465
        %v1467 = vpop.f32.mrb[0].mxu0
        %1468 = vmatprep.mubr.f32.mxu0 0.0
        %1469 = vmatmul.mubr.f32.gmra.mrb[0].mxu0 %v1123
        %v1470 = vpop.f32.mrb[0].mxu0
        %v1471 = vadd.f32 %v984, %v1470
        %v1472 = vpop.f32.mrb[0].mxu0
        %1473 = vmatprep.mubr.f32.mxu0 0.0
        %1474 = vmatmul.mubr.f32.gmra.mrb[0].mxu0 %v1126
        %v1475 = vpop.f32.mrb[0].mxu0
        %v1476 = vadd.f32 %v984, %v1475
        %v1477 = vpop.f32.mrb[0].mxu0
        %1478 = vmatprep.mubr.f32.mxu0 0.0
        %1479 = vmatmul.mubr.f32.gmra.mrb[0].mxu0 %v1129
        %v1480 = vpop.f32.mrb[0].mxu0
        %v1481 = vadd.f32 %v984, %v1480
        %v1482 = vpop.f32.mrb[0].mxu0
        %1483 = vmatprep.mubr.f32.mxu0 0.0
        %1484 = vmatmul.mubr.f32.gmra.mrb[0].mxu0 %v1132
        %v1485 = vpop.f32.mrb[0].mxu0
        %v1486 = vadd.f32 %v984, %v1485
        %v1487 = vpop.f32.mrb[0].mxu0
        %1488 = vmatprep.mubr.f32.mxu0 0.0
        %1489 = vmatmul.mubr.f32.gmra.mrb[0].mxu0 %v1135
        %v1490 = vpop.f32.mrb[0].mxu0
        %v1491 = vadd.f32 %v984, %v1490
        %v1492 = vpop.f32.mrb[0].mxu0
        %1493 = vmatprep.mubr.f32.mxu0 0.0
        %1494 = vmatmul.mubr.f32.gmra.mrb[0].mxu0 %v1138
        %v1495 = vpop.f32.mrb[0].mxu0
        %v1496 = vadd.f32 %v984, %v1495
        %v1497 = vpop.f32.mrb[0].mxu0
        %1498 = vmatprep.mubr.f32.mxu0 0.0
        %1499 = vmatmul.mubr.f32.gmra.mrb[0].mxu0 %v1141
        %v1500 = vpop.f32.mrb[0].mxu0
        %v1501 = vadd.f32 %v984, %v1500
        %v1502 = vpop.f32.mrb[0].mxu0
        %1503 = vmatprep.mubr.f32.mxu0 0.0
        %1504 = vmatmul.mubr.f32.gmra.mrb[0].mxu0 %v1144
        %v1505 = vpop.f32.mrb[0].mxu0
        %v1506 = vadd.f32 %v984, %v1505
        %v1507 = vpop.f32.mrb[0].mxu0
        %1508 = vmatprep.mubr.f32.mxu0 0.0
        %1509 = vmatmul.mubr.f32.gmra.mrb[0].mxu0 %v1147
        %v1510 = vpop.f32.mrb[0].mxu0
        %v1511 = vadd.f32 %v984, %v1510
        %v1512 = vpop.f32.mrb[0].mxu0
        %1513 = vmatprep.mubr.f32.mxu0 0.0
        %1514 = vmatmul.mubr.f32.gmra.mrb[0].mxu0 %v1150
        %v1515 = vpop.f32.mrb[0].mxu0
        %v1516 = vadd.f32 %v984, %v1515
        %v1517 = vpop.f32.mrb[0].mxu0
        %1518 = vmatprep.mubr.f32.mxu0 0.0
        %1519 = vmatmul.mubr.f32.gmra.mrb[0].mxu0 %v1153
        %v1520 = vpop.f32.mrb[0].mxu0
        %v1521 = vadd.f32 %v984, %v1520
        %v1522 = vpop.f32.mrb[0].mxu0
        %1523 = vmatprep.mubr.f32.mxu0 0.0
        %1524 = vmatmul.mubr.f32.gmra.mrb[0].mxu0 %v1156
        %v1525 = vpop.f32.mrb[0].mxu0
        %v1526 = vadd.f32 %v984, %v1525
        %v1527 = vpop.f32.mrb[0].mxu0
        %1528 = vmatprep.mubr.f32.mxu0 0.0
        %1529 = vmatmul.mubr.f32.gmra.mrb[0].mxu0 %v1159
        %v1530 = vpop.f32.mrb[0].mxu0
        %v1531 = vadd.f32 %v984, %v1530
        %v1532 = vpop.f32.mrb[0].mxu0
        %1533 = vmatprep.mubr.f32.mxu0 0.0
        %1534 = vmatmul.mubr.f32.gmra.mrb[0].mxu0 %v1162
        %v1535 = vpop.f32.mrb[0].mxu0
        %v1536 = vadd.f32 %v984, %v1535
        %v1537 = vpop.f32.mrb[0].mxu0
        %1538 = vmatprep.mubr.f32.mxu0 0.0
        %1539 = vmatmul.mubr.f32.gmra.mrb[0].mxu0 %v1165
        %v1540 = vpop.f32.mrb[0].mxu0
        %v1541 = vadd.f32 %v984, %v1540
        %v1542 = vpop.f32.mrb[0].mxu0
        %1543 = vmatprep.mubr.f32.mxu0 0.0
        %1544 = vmatmul.mubr.f32.gmra.mrb[0].mxu0 %v1168
        %v1545 = vpop.f32.mrb[0].mxu0
        %v1546 = vadd.f32 %v984, %v1545
        %v1547 = vpop.f32.mrb[0].mxu0
        %1548 = vmatprep.mubr.f32.mxu0 0.0
        %1549 = vmatmul.mubr.f32.gmra.mrb[0].mxu0 %v1171
        %v1550 = vpop.f32.mrb[0].mxu0
        %v1551 = vadd.f32 %v984, %v1550
        %v1552 = vpop.f32.mrb[0].mxu0
        %1553 = vmatprep.mubr.f32.mxu0 0.0
        %1554 = vmatmul.mubr.f32.gmra.mrb[0].mxu0 %v1174
        %v1555 = vpop.f32.mrb[0].mxu0
        %v1556 = vadd.f32 %v984, %v1555
        %v1557 = vpop.f32.mrb[0].mxu0
        %1558 = vmatprep.mubr.f32.mxu0 0.0
        %1559 = vmatmul.mubr.f32.gmra.mrb[0].mxu0 %v1177
        %v1560 = vpop.f32.mrb[0].mxu0
        %v1561 = vadd.f32 %v984, %v1560
        %v1562 = vpop.f32.mrb[0].mxu0
        %1563 = vdwg.mxu0
        %v1564 = vmax.f32 %v1246, 0.0
        %v1565 = vmax.f32 %v1251, 0.0
        %v1566 = vmax.f32 %v1256, 0.0
        %v1567 = vmax.f32 %v1261, 0.0
        %v1568 = vmax.f32 %v1266, 0.0
        %v1569 = vmax.f32 %v1271, 0.0
        %v1570 = vmax.f32 %v1276, 0.0
        %v1571 = vmax.f32 %v1281, 0.0
        %v1572 = vmax.f32 %v1286, 0.0
        %v1573 = vmax.f32 %v1291, 0.0
        %v1574 = vmax.f32 %v1296, 0.0
        %v1575 = vmax.f32 %v1301, 0.0
        %v1576 = vmax.f32 %v1306, 0.0
        %v1577 = vmax.f32 %v1311, 0.0
        %v1578 = vmax.f32 %v1316, 0.0
        %v1579 = vmax.f32 %v1321, 0.0
        %v1580 = vmax.f32 %v1326, 0.0
        %v1581 = vmax.f32 %v1331, 0.0
        %v1582 = vmax.f32 %v1336, 0.0
        %v1583 = vmax.f32 %v1341, 0.0
        %v1584 = vmax.f32 %v1346, 0.0
        %v1585 = vmax.f32 %v1351, 0.0
        %v1586 = vmax.f32 %v1356, 0.0
        %v1587 = vmax.f32 %v1361, 0.0
        %v1588 = vmax.f32 %v1366, 0.0
        %v1589 = vmax.f32 %v1371, 0.0
        %v1590 = vmax.f32 %v1376, 0.0
        %v1591 = vmax.f32 %v1381, 0.0
        %v1592 = vmax.f32 %v1386, 0.0
        %v1593 = vmax.f32 %v1391, 0.0
        %v1594 = vmax.f32 %v1396, 0.0
        %v1595 = vmax.f32 %v1401, 0.0
        %v1596 = vmax.f32 %v1406, 0.0
        %v1597 = vmax.f32 %v1411, 0.0
        %v1598 = vmax.f32 %v1416, 0.0
        %v1599 = vmax.f32 %v1421, 0.0
        %v1600 = vmax.f32 %v1426, 0.0
        %v1601 = vmax.f32 %v1431, 0.0
        %v1602 = vmax.f32 %v1436, 0.0
        %v1603 = vmax.f32 %v1441, 0.0
        %v1604 = vmax.f32 %v1446, 0.0
        %v1605 = vmax.f32 %v1451, 0.0
        %v1606 = vmax.f32 %v1456, 0.0
        %v1607 = vmax.f32 %v1461, 0.0
        %v1608 = vmax.f32 %v1466, 0.0
        %v1609 = vmax.f32 %v1471, 0.0
        %v1610 = vmax.f32 %v1476, 0.0
        %v1611 = vmax.f32 %v1481, 0.0
        %v1612 = vmax.f32 %v1486, 0.0
        %v1613 = vmax.f32 %v1491, 0.0
        %v1614 = vmax.f32 %v1496, 0.0
        %v1615 = vmax.f32 %v1501, 0.0
        %v1616 = vmax.f32 %v1506, 0.0
        %v1617 = vmax.f32 %v1511, 0.0
        %v1618 = vmax.f32 %v1516, 0.0
        %v1619 = vmax.f32 %v1521, 0.0
        %v1620 = vmax.f32 %v1526, 0.0
        %v1621 = vmax.f32 %v1531, 0.0
        %v1622 = vmax.f32 %v1536, 0.0
        %v1623 = vmax.f32 %v1541, 0.0
        %v1624 = vmax.f32 %v1546, 0.0
        %v1625 = vmax.f32 %v1551, 0.0
        %v1626 = vmax.f32 %v1556, 0.0
        %v1627 = vmax.f32 %v1561, 0.0
        %v1628 = vld [vmem:[#allocation10] sm:$0x1]
        %v1630 = vlaneseq
        %v1631 = vshrl.u32 %v1630, 7
        %v1632 = vsub.s32 0, %v1631
        %v1633 = vrot.slane %v1628, %v1632
        %v1635 = vmul.f32 %v1564, %v1633
        %v1636 = vmul.f32 %v1565, %v1633
        %v1637 = vmul.f32 %v1566, %v1633
        %v1638 = vmul.f32 %v1567, %v1633
        %v1639 = vmul.f32 %v1568, %v1633
        %v1640 = vmul.f32 %v1569, %v1633
        %v1641 = vmul.f32 %v1570, %v1633
        %v1642 = vmul.f32 %v1571, %v1633
        %v1643 = vmul.f32 %v1572, %v1633
        %v1644 = vmul.f32 %v1573, %v1633
        %v1645 = vmul.f32 %v1574, %v1633
        %v1646 = vmul.f32 %v1575, %v1633
        %v1647 = vmul.f32 %v1576, %v1633
        %v1648 = vmul.f32 %v1577, %v1633
        %v1649 = vmul.f32 %v1578, %v1633
        %v1650 = vmul.f32 %v1579, %v1633
        %v1651 = vmul.f32 %v1580, %v1633
        %v1652 = vmul.f32 %v1581, %v1633
        %v1653 = vmul.f32 %v1582, %v1633
        %v1654 = vmul.f32 %v1583, %v1633
        %v1655 = vmul.f32 %v1584, %v1633
        %v1656 = vmul.f32 %v1585, %v1633
        %v1657 = vmul.f32 %v1586, %v1633
        %v1658 = vmul.f32 %v1587, %v1633
        %v1659 = vmul.f32 %v1588, %v1633
        %v1660 = vmul.f32 %v1589, %v1633
        %v1661 = vmul.f32 %v1590, %v1633
        %v1662 = vmul.f32 %v1591, %v1633
        %v1663 = vmul.f32 %v1592, %v1633
        %v1664 = vmul.f32 %v1593, %v1633
        %v1665 = vmul.f32 %v1594, %v1633
        %v1666 = vmul.f32 %v1595, %v1633
        %v1667 = vmul.f32 %v1596, %v1633
        %v1668 = vmul.f32 %v1597, %v1633
        %v1669 = vmul.f32 %v1598, %v1633
        %v1670 = vmul.f32 %v1599, %v1633
        %v1671 = vmul.f32 %v1600, %v1633
        %v1672 = vmul.f32 %v1601, %v1633
        %v1673 = vmul.f32 %v1602, %v1633
        %v1674 = vmul.f32 %v1603, %v1633
        %v1675 = vmul.f32 %v1604, %v1633
        %v1676 = vmul.f32 %v1605, %v1633
        %v1677 = vmul.f32 %v1606, %v1633
        %v1678 = vmul.f32 %v1607, %v1633
        %v1679 = vmul.f32 %v1608, %v1633
        %v1680 = vmul.f32 %v1609, %v1633
        %v1681 = vmul.f32 %v1610, %v1633
        %v1682 = vmul.f32 %v1611, %v1633
        %v1683 = vmul.f32 %v1612, %v1633
        %v1684 = vmul.f32 %v1613, %v1633
        %v1685 = vmul.f32 %v1614, %v1633
        %v1686 = vmul.f32 %v1615, %v1633
        %v1687 = vmul.f32 %v1616, %v1633
        %v1688 = vmul.f32 %v1617, %v1633
        %v1689 = vmul.f32 %v1618, %v1633
        %v1690 = vmul.f32 %v1619, %v1633
        %v1691 = vmul.f32 %v1620, %v1633
        %v1692 = vmul.f32 %v1621, %v1633
        %v1693 = vmul.f32 %v1622, %v1633
        %v1694 = vmul.f32 %v1623, %v1633
        %v1695 = vmul.f32 %v1624, %v1633
        %v1696 = vmul.f32 %v1625, %v1633
        %v1697 = vmul.f32 %v1626, %v1633
        %v1698 = vmul.f32 %v1627, %v1633
        %v1699 = vsel %vm986, %v1635, 0.0
        %1700 = vadd.xlane.f32.xlu0 %v1699
        %v1701 = vpop.xlane.xlu0 %1700
        %v1702 = vsel %vm986, %v1636, 0.0
        %1703 = vadd.xlane.f32.xlu0 %v1702
        %v1704 = vpop.xlane.xlu0 %1703
        %v1705 = vsel %vm986, %v1637, 0.0
        %1706 = vadd.xlane.f32.xlu0 %v1705
        %v1707 = vpop.xlane.xlu0 %1706
        %v1708 = vsel %vm986, %v1638, 0.0
        %1709 = vadd.xlane.f32.xlu0 %v1708
        %v1710 = vpop.xlane.xlu0 %1709
        %v1711 = vsel %vm986, %v1639, 0.0
        %1712 = vadd.xlane.f32.xlu0 %v1711
        %v1713 = vpop.xlane.xlu0 %1712
        %v1714 = vsel %vm986, %v1640, 0.0
        %1715 = vadd.xlane.f32.xlu0 %v1714
        %v1716 = vpop.xlane.xlu0 %1715
        %v1717 = vsel %vm986, %v1641, 0.0
        %1718 = vadd.xlane.f32.xlu0 %v1717
        %v1719 = vpop.xlane.xlu0 %1718
        %v1720 = vsel %vm986, %v1642, 0.0
        %1721 = vadd.xlane.f32.xlu0 %v1720
        %v1722 = vpop.xlane.xlu0 %1721
        %v1723 = vsel %vm986, %v1643, 0.0
        %1724 = vadd.xlane.f32.xlu0 %v1723
        %v1725 = vpop.xlane.xlu0 %1724
        %v1726 = vsel %vm986, %v1644, 0.0
        %1727 = vadd.xlane.f32.xlu0 %v1726
        %v1728 = vpop.xlane.xlu0 %1727
        %v1729 = vsel %vm986, %v1645, 0.0
        %1730 = vadd.xlane.f32.xlu0 %v1729
        %v1731 = vpop.xlane.xlu0 %1730
        %v1732 = vsel %vm986, %v1646, 0.0
        %1733 = vadd.xlane.f32.xlu0 %v1732
        %v1734 = vpop.xlane.xlu0 %1733
        %v1735 = vsel %vm986, %v1647, 0.0
        %1736 = vadd.xlane.f32.xlu0 %v1735
        %v1737 = vpop.xlane.xlu0 %1736
        %v1738 = vsel %vm986, %v1648, 0.0
        %1739 = vadd.xlane.f32.xlu0 %v1738
        %v1740 = vpop.xlane.xlu0 %1739
        %v1741 = vsel %vm986, %v1649, 0.0
        %1742 = vadd.xlane.f32.xlu0 %v1741
        %v1743 = vpop.xlane.xlu0 %1742
        %v1744 = vsel %vm986, %v1650, 0.0
        %1745 = vadd.xlane.f32.xlu0 %v1744
        %v1746 = vpop.xlane.xlu0 %1745
        %v1747 = vsel %vm986, %v1651, 0.0
        %1748 = vadd.xlane.f32.xlu0 %v1747
        %v1749 = vpop.xlane.xlu0 %1748
        %v1750 = vsel %vm986, %v1652, 0.0
        %1751 = vadd.xlane.f32.xlu0 %v1750
        %v1752 = vpop.xlane.xlu0 %1751
        %v1753 = vsel %vm986, %v1653, 0.0
        %1754 = vadd.xlane.f32.xlu0 %v1753
        %v1755 = vpop.xlane.xlu0 %1754
        %v1756 = vsel %vm986, %v1654, 0.0
        %1757 = vadd.xlane.f32.xlu0 %v1756
        %v1758 = vpop.xlane.xlu0 %1757
        %v1759 = vsel %vm986, %v1655, 0.0
        %1760 = vadd.xlane.f32.xlu0 %v1759
        %v1761 = vpop.xlane.xlu0 %1760
        %v1762 = vsel %vm986, %v1656, 0.0
        %1763 = vadd.xlane.f32.xlu0 %v1762
        %v1764 = vpop.xlane.xlu0 %1763
        %v1765 = vsel %vm986, %v1657, 0.0
        %1766 = vadd.xlane.f32.xlu0 %v1765
        %v1767 = vpop.xlane.xlu0 %1766
        %v1768 = vsel %vm986, %v1658, 0.0
        %1769 = vadd.xlane.f32.xlu0 %v1768
        %v1770 = vpop.xlane.xlu0 %1769
        %v1771 = vsel %vm986, %v1659, 0.0
        %1772 = vadd.xlane.f32.xlu0 %v1771
        %v1773 = vpop.xlane.xlu0 %1772
        %v1774 = vsel %vm986, %v1660, 0.0
        %1775 = vadd.xlane.f32.xlu0 %v1774
        %v1776 = vpop.xlane.xlu0 %1775
        %v1777 = vsel %vm986, %v1661, 0.0
        %1778 = vadd.xlane.f32.xlu0 %v1777
        %v1779 = vpop.xlane.xlu0 %1778
        %v1780 = vsel %vm986, %v1662, 0.0
        %1781 = vadd.xlane.f32.xlu0 %v1780
        %v1782 = vpop.xlane.xlu0 %1781
        %v1783 = vsel %vm986, %v1663, 0.0
        %1784 = vadd.xlane.f32.xlu0 %v1783
        %v1785 = vpop.xlane.xlu0 %1784
        %v1786 = vsel %vm986, %v1664, 0.0
        %1787 = vadd.xlane.f32.xlu0 %v1786
        %v1788 = vpop.xlane.xlu0 %1787
        %v1789 = vsel %vm986, %v1665, 0.0
        %1790 = vadd.xlane.f32.xlu0 %v1789
        %v1791 = vpop.xlane.xlu0 %1790
        %v1792 = vsel %vm986, %v1666, 0.0
        %1793 = vadd.xlane.f32.xlu0 %v1792
        %v1794 = vpop.xlane.xlu0 %1793
        %v1795 = vsel %vm986, %v1667, 0.0
        %1796 = vadd.xlane.f32.xlu0 %v1795
        %v1797 = vpop.xlane.xlu0 %1796
        %v1798 = vsel %vm986, %v1668, 0.0
        %1799 = vadd.xlane.f32.xlu0 %v1798
        %v1800 = vpop.xlane.xlu0 %1799
        %v1801 = vsel %vm986, %v1669, 0.0
        %1802 = vadd.xlane.f32.xlu0 %v1801
        %v1803 = vpop.xlane.xlu0 %1802
        %v1804 = vsel %vm986, %v1670, 0.0
        %1805 = vadd.xlane.f32.xlu0 %v1804
        %v1806 = vpop.xlane.xlu0 %1805
        %v1807 = vsel %vm986, %v1671, 0.0
        %1808 = vadd.xlane.f32.xlu0 %v1807
        %v1809 = vpop.xlane.xlu0 %1808
        %v1810 = vsel %vm986, %v1672, 0.0
        %1811 = vadd.xlane.f32.xlu0 %v1810
        %v1812 = vpop.xlane.xlu0 %1811
        %v1813 = vsel %vm986, %v1673, 0.0
        %1814 = vadd.xlane.f32.xlu0 %v1813
        %v1815 = vpop.xlane.xlu0 %1814
        %v1816 = vsel %vm986, %v1674, 0.0
        %1817 = vadd.xlane.f32.xlu0 %v1816
        %v1818 = vpop.xlane.xlu0 %1817
        %v1819 = vsel %vm986, %v1675, 0.0
        %1820 = vadd.xlane.f32.xlu0 %v1819
        %v1821 = vpop.xlane.xlu0 %1820
        %v1822 = vsel %vm986, %v1676, 0.0
        %1823 = vadd.xlane.f32.xlu0 %v1822
        %v1824 = vpop.xlane.xlu0 %1823
        %v1825 = vsel %vm986, %v1677, 0.0
        %1826 = vadd.xlane.f32.xlu0 %v1825
        %v1827 = vpop.xlane.xlu0 %1826
        %v1828 = vsel %vm986, %v1678, 0.0
        %1829 = vadd.xlane.f32.xlu0 %v1828
        %v1830 = vpop.xlane.xlu0 %1829
        %v1831 = vsel %vm986, %v1679, 0.0
        %1832 = vadd.xlane.f32.xlu0 %v1831
        %v1833 = vpop.xlane.xlu0 %1832
        %v1834 = vsel %vm986, %v1680, 0.0
        %1835 = vadd.xlane.f32.xlu0 %v1834
        %v1836 = vpop.xlane.xlu0 %1835
        %v1837 = vsel %vm986, %v1681, 0.0
        %1838 = vadd.xlane.f32.xlu0 %v1837
        %v1839 = vpop.xlane.xlu0 %1838
        %v1840 = vsel %vm986, %v1682, 0.0
        %1841 = vadd.xlane.f32.xlu0 %v1840
        %v1842 = vpop.xlane.xlu0 %1841
        %v1843 = vsel %vm986, %v1683, 0.0
        %1844 = vadd.xlane.f32.xlu0 %v1843
        %v1845 = vpop.xlane.xlu0 %1844
        %v1846 = vsel %vm986, %v1684, 0.0
        %1847 = vadd.xlane.f32.xlu0 %v1846
        %v1848 = vpop.xlane.xlu0 %1847
        %v1849 = vsel %vm986, %v1685, 0.0
        %1850 = vadd.xlane.f32.xlu0 %v1849
        %v1851 = vpop.xlane.xlu0 %1850
        %v1852 = vsel %vm986, %v1686, 0.0
        %1853 = vadd.xlane.f32.xlu0 %v1852
        %v1854 = vpop.xlane.xlu0 %1853
        %v1855 = vsel %vm986, %v1687, 0.0
        %1856 = vadd.xlane.f32.xlu0 %v1855
        %v1857 = vpop.xlane.xlu0 %1856
        %v1858 = vsel %vm986, %v1688, 0.0
        %1859 = vadd.xlane.f32.xlu0 %v1858
        %v1860 = vpop.xlane.xlu0 %1859
        %v1861 = vsel %vm986, %v1689, 0.0
        %1862 = vadd.xlane.f32.xlu0 %v1861
        %v1863 = vpop.xlane.xlu0 %1862
        %v1864 = vsel %vm986, %v1690, 0.0
        %1865 = vadd.xlane.f32.xlu0 %v1864
        %v1866 = vpop.xlane.xlu0 %1865
        %v1867 = vsel %vm986, %v1691, 0.0
        %1868 = vadd.xlane.f32.xlu0 %v1867
        %v1869 = vpop.xlane.xlu0 %1868
        %v1870 = vsel %vm986, %v1692, 0.0
        %1871 = vadd.xlane.f32.xlu0 %v1870
        %v1872 = vpop.xlane.xlu0 %1871
        %v1873 = vsel %vm986, %v1693, 0.0
        %1874 = vadd.xlane.f32.xlu0 %v1873
        %v1875 = vpop.xlane.xlu0 %1874
        %v1876 = vsel %vm986, %v1694, 0.0
        %1877 = vadd.xlane.f32.xlu0 %v1876
        %v1878 = vpop.xlane.xlu0 %1877
        %v1879 = vsel %vm986, %v1695, 0.0
        %1880 = vadd.xlane.f32.xlu0 %v1879
        %v1881 = vpop.xlane.xlu0 %1880
        %v1882 = vsel %vm986, %v1696, 0.0
        %1883 = vadd.xlane.f32.xlu0 %v1882
        %v1884 = vpop.xlane.xlu0 %1883
        %v1885 = vsel %vm986, %v1697, 0.0
        %1886 = vadd.xlane.f32.xlu0 %v1885
        %v1887 = vpop.xlane.xlu0 %1886
        %v1888 = vsel %vm986, %v1698, 0.0
        %1889 = vadd.xlane.f32.xlu0 %v1888
        %v1890 = vpop.xlane.xlu0 %1889
        %s1891 = sld [smem:[#allocation2]]
        %v1892 = vstv %s1891
        %v1893 = vadd.f32 %v1701, %v1892
        %v1894 = vadd.f32 %v1704, %v1892
        %v1895 = vadd.f32 %v1707, %v1892
        %v1896 = vadd.f32 %v1710, %v1892
        %v1897 = vadd.f32 %v1713, %v1892
        %v1898 = vadd.f32 %v1716, %v1892
        %v1899 = vadd.f32 %v1719, %v1892
        %v1900 = vadd.f32 %v1722, %v1892
        %v1901 = vadd.f32 %v1725, %v1892
        %v1902 = vadd.f32 %v1728, %v1892
        %v1903 = vadd.f32 %v1731, %v1892
        %v1904 = vadd.f32 %v1734, %v1892
        %v1905 = vadd.f32 %v1737, %v1892
        %v1906 = vadd.f32 %v1740, %v1892
        %v1907 = vadd.f32 %v1743, %v1892
        %v1908 = vadd.f32 %v1746, %v1892
        %v1909 = vadd.f32 %v1749, %v1892
        %v1910 = vadd.f32 %v1752, %v1892
        %v1911 = vadd.f32 %v1755, %v1892
        %v1912 = vadd.f32 %v1758, %v1892
        %v1913 = vadd.f32 %v1761, %v1892
        %v1914 = vadd.f32 %v1764, %v1892
        %v1915 = vadd.f32 %v1767, %v1892
        %v1916 = vadd.f32 %v1770, %v1892
        %v1917 = vadd.f32 %v1773, %v1892
        %v1918 = vadd.f32 %v1776, %v1892
        %v1919 = vadd.f32 %v1779, %v1892
        %v1920 = vadd.f32 %v1782, %v1892
        %v1921 = vadd.f32 %v1785, %v1892
        %v1922 = vadd.f32 %v1788, %v1892
        %v1923 = vadd.f32 %v1791, %v1892
        %v1924 = vadd.f32 %v1794, %v1892
        %v1925 = vadd.f32 %v1797, %v1892
        %v1926 = vadd.f32 %v1800, %v1892
        %v1927 = vadd.f32 %v1803, %v1892
        %v1928 = vadd.f32 %v1806, %v1892
        %v1929 = vadd.f32 %v1809, %v1892
        %v1930 = vadd.f32 %v1812, %v1892
        %v1931 = vadd.f32 %v1815, %v1892
        %v1932 = vadd.f32 %v1818, %v1892
        %v1933 = vadd.f32 %v1821, %v1892
        %v1934 = vadd.f32 %v1824, %v1892
        %v1935 = vadd.f32 %v1827, %v1892
        %v1936 = vadd.f32 %v1830, %v1892
        %v1937 = vadd.f32 %v1833, %v1892
        %v1938 = vadd.f32 %v1836, %v1892
        %v1939 = vadd.f32 %v1839, %v1892
        %v1940 = vadd.f32 %v1842, %v1892
        %v1941 = vadd.f32 %v1845, %v1892
        %v1942 = vadd.f32 %v1848, %v1892
        %v1943 = vadd.f32 %v1851, %v1892
        %v1944 = vadd.f32 %v1854, %v1892
        %v1945 = vadd.f32 %v1857, %v1892
        %v1946 = vadd.f32 %v1860, %v1892
        %v1947 = vadd.f32 %v1863, %v1892
        %v1948 = vadd.f32 %v1866, %v1892
        %v1949 = vadd.f32 %v1869, %v1892
        %v1950 = vadd.f32 %v1872, %v1892
        %v1951 = vadd.f32 %v1875, %v1892
        %v1952 = vadd.f32 %v1878, %v1892
        %v1953 = vadd.f32 %v1881, %v1892
        %v1954 = vadd.f32 %v1884, %v1892
        %v1955 = vadd.f32 %v1887, %v1892
        %v1956 = vadd.f32 %v1890, %v1892
        %v1957 = vmax.f32 %v1893, 0.0
        %v1958 = vmax.f32 %v1894, 0.0
        %v1959 = vmax.f32 %v1895, 0.0
        %v1960 = vmax.f32 %v1896, 0.0
        %v1961 = vmax.f32 %v1897, 0.0
        %v1962 = vmax.f32 %v1898, 0.0
        %v1963 = vmax.f32 %v1899, 0.0
        %v1964 = vmax.f32 %v1900, 0.0
        %v1965 = vmax.f32 %v1901, 0.0
        %v1966 = vmax.f32 %v1902, 0.0
        %v1967 = vmax.f32 %v1903, 0.0
        %v1968 = vmax.f32 %v1904, 0.0
        %v1969 = vmax.f32 %v1905, 0.0
        %v1970 = vmax.f32 %v1906, 0.0
        %v1971 = vmax.f32 %v1907, 0.0
        %v1972 = vmax.f32 %v1908, 0.0
        %v1973 = vmax.f32 %v1909, 0.0
        %v1974 = vmax.f32 %v1910, 0.0
        %v1975 = vmax.f32 %v1911, 0.0
        %v1976 = vmax.f32 %v1912, 0.0
        %v1977 = vmax.f32 %v1913, 0.0
        %v1978 = vmax.f32 %v1914, 0.0
        %v1979 = vmax.f32 %v1915, 0.0
        %v1980 = vmax.f32 %v1916, 0.0
        %v1981 = vmax.f32 %v1917, 0.0
        %v1982 = vmax.f32 %v1918, 0.0
        %v1983 = vmax.f32 %v1919, 0.0
        %v1984 = vmax.f32 %v1920, 0.0
        %v1985 = vmax.f32 %v1921, 0.0
        %v1986 = vmax.f32 %v1922, 0.0
        %v1987 = vmax.f32 %v1923, 0.0
        %v1988 = vmax.f32 %v1924, 0.0
        %v1989 = vmax.f32 %v1925, 0.0
        %v1990 = vmax.f32 %v1926, 0.0
        %v1991 = vmax.f32 %v1927, 0.0
        %v1992 = vmax.f32 %v1928, 0.0
        %v1993 = vmax.f32 %v1929, 0.0
        %v1994 = vmax.f32 %v1930, 0.0
        %v1995 = vmax.f32 %v1931, 0.0
        %v1996 = vmax.f32 %v1932, 0.0
        %v1997 = vmax.f32 %v1933, 0.0
        %v1998 = vmax.f32 %v1934, 0.0
        %v1999 = vmax.f32 %v1935, 0.0
        %v2000 = vmax.f32 %v1936, 0.0
        %v2001 = vmax.f32 %v1937, 0.0
        %v2002 = vmax.f32 %v1938, 0.0
        %v2003 = vmax.f32 %v1939, 0.0
        %v2004 = vmax.f32 %v1940, 0.0
        %v2005 = vmax.f32 %v1941, 0.0
        %v2006 = vmax.f32 %v1942, 0.0
        %v2007 = vmax.f32 %v1943, 0.0
        %v2008 = vmax.f32 %v1944, 0.0
        %v2009 = vmax.f32 %v1945, 0.0
        %v2010 = vmax.f32 %v1946, 0.0
        %v2011 = vmax.f32 %v1947, 0.0
        %v2012 = vmax.f32 %v1948, 0.0
        %v2013 = vmax.f32 %v1949, 0.0
        %v2014 = vmax.f32 %v1950, 0.0
        %v2015 = vmax.f32 %v1951, 0.0
        %v2016 = vmax.f32 %v1952, 0.0
        %v2017 = vmax.f32 %v1953, 0.0
        %v2018 = vmax.f32 %v1954, 0.0
        %v2019 = vmax.f32 %v1955, 0.0
        %v2020 = vmax.f32 %v1956, 0.0
        %v2021 = vsub.f32 0.0, %v1957
        %v2022 = vsub.f32 0.0, %v1958
        %v2023 = vsub.f32 0.0, %v1959
        %v2024 = vsub.f32 0.0, %v1960
        %v2025 = vsub.f32 0.0, %v1961
        %v2026 = vsub.f32 0.0, %v1962
        %v2027 = vsub.f32 0.0, %v1963
        %v2028 = vsub.f32 0.0, %v1964
        %v2029 = vsub.f32 0.0, %v1965
        %v2030 = vsub.f32 0.0, %v1966
        %v2031 = vsub.f32 0.0, %v1967
        %v2032 = vsub.f32 0.0, %v1968
        %v2033 = vsub.f32 0.0, %v1969
        %v2034 = vsub.f32 0.0, %v1970
        %v2035 = vsub.f32 0.0, %v1971
        %v2036 = vsub.f32 0.0, %v1972
        %v2037 = vsub.f32 0.0, %v1973
        %v2038 = vsub.f32 0.0, %v1974
        %v2039 = vsub.f32 0.0, %v1975
        %v2040 = vsub.f32 0.0, %v1976
        %v2041 = vsub.f32 0.0, %v1977
        %v2042 = vsub.f32 0.0, %v1978
        %v2043 = vsub.f32 0.0, %v1979
        %v2044 = vsub.f32 0.0, %v1980
        %v2045 = vsub.f32 0.0, %v1981
        %v2046 = vsub.f32 0.0, %v1982
        %v2047 = vsub.f32 0.0, %v1983
        %v2048 = vsub.f32 0.0, %v1984
        %v2049 = vsub.f32 0.0, %v1985
        %v2050 = vsub.f32 0.0, %v1986
        %v2051 = vsub.f32 0.0, %v1987
        %v2052 = vsub.f32 0.0, %v1988
        %v2053 = vsub.f32 0.0, %v1989
        %v2054 = vsub.f32 0.0, %v1990
        %v2055 = vsub.f32 0.0, %v1991
        %v2056 = vsub.f32 0.0, %v1992
        %v2057 = vsub.f32 0.0, %v1993
        %v2058 = vsub.f32 0.0, %v1994
        %v2059 = vsub.f32 0.0, %v1995
        %v2060 = vsub.f32 0.0, %v1996
        %v2061 = vsub.f32 0.0, %v1997
        %v2062 = vsub.f32 0.0, %v1998
        %v2063 = vsub.f32 0.0, %v1999
        %v2064 = vsub.f32 0.0, %v2000
        %v2065 = vsub.f32 0.0, %v2001
        %v2066 = vsub.f32 0.0, %v2002
        %v2067 = vsub.f32 0.0, %v2003
        %v2068 = vsub.f32 0.0, %v2004
        %v2069 = vsub.f32 0.0, %v2005
        %v2070 = vsub.f32 0.0, %v2006
        %v2071 = vsub.f32 0.0, %v2007
        %v2072 = vsub.f32 0.0, %v2008
        %v2073 = vsub.f32 0.0, %v2009
        %v2074 = vsub.f32 0.0, %v2010
        %v2075 = vsub.f32 0.0, %v2011
        %v2076 = vsub.f32 0.0, %v2012
        %v2077 = vsub.f32 0.0, %v2013
        %v2078 = vsub.f32 0.0, %v2014
        %v2079 = vsub.f32 0.0, %v2015
        %v2080 = vsub.f32 0.0, %v2016
        %v2081 = vsub.f32 0.0, %v2017
        %v2082 = vsub.f32 0.0, %v2018
        %v2083 = vsub.f32 0.0, %v2019
        %v2084 = vsub.f32 0.0, %v2020
        %v2085 = vmul.f32 %v2021, 1.442695
        %v2086 = vpow.pop %v2085
        %v2087 = vmul.f32 %v2022, 1.442695
        %v2088 = vpow.pop %v2087
        %v2089 = vmul.f32 %v2023, 1.442695
        %v2090 = vpow.pop %v2089
        %v2091 = vmul.f32 %v2024, 1.442695
        %v2092 = vpow.pop %v2091
        %v2093 = vmul.f32 %v2025, 1.442695
        %v2094 = vpow.pop %v2093
        %v2095 = vmul.f32 %v2026, 1.442695
        %v2096 = vpow.pop %v2095
        %v2097 = vmul.f32 %v2027, 1.442695
        %v2098 = vpow.pop %v2097
        %v2099 = vmul.f32 %v2028, 1.442695
        %v2100 = vpow.pop %v2099
        %v2101 = vmul.f32 %v2029, 1.442695
        %v2102 = vpow.pop %v2101
        %v2103 = vmul.f32 %v2030, 1.442695
        %v2104 = vpow.pop %v2103
        %v2105 = vmul.f32 %v2031, 1.442695
        %v2106 = vpow.pop %v2105
        %v2107 = vmul.f32 %v2032, 1.442695
        %v2108 = vpow.pop %v2107
        %v2109 = vmul.f32 %v2033, 1.442695
        %v2110 = vpow.pop %v2109
        %v2111 = vmul.f32 %v2034, 1.442695
        %v2112 = vpow.pop %v2111
        %v2113 = vmul.f32 %v2035, 1.442695
        %v2114 = vpow.pop %v2113
        %v2115 = vmul.f32 %v2036, 1.442695
        %v2116 = vpow.pop %v2115
        %v2117 = vmul.f32 %v2037, 1.442695
        %v2118 = vpow.pop %v2117
        %v2119 = vmul.f32 %v2038, 1.442695
        %v2120 = vpow.pop %v2119
        %v2121 = vmul.f32 %v2039, 1.442695
        %v2122 = vpow.pop %v2121
        %v2123 = vmul.f32 %v2040, 1.442695
        %v2124 = vpow.pop %v2123
        %v2125 = vmul.f32 %v2041, 1.442695
        %v2126 = vpow.pop %v2125
        %v2127 = vmul.f32 %v2042, 1.442695
        %v2128 = vpow.pop %v2127
        %v2129 = vmul.f32 %v2043, 1.442695
        %v2130 = vpow.pop %v2129
        %v2131 = vmul.f32 %v2044, 1.442695
        %v2132 = vpow.pop %v2131
        %v2133 = vmul.f32 %v2045, 1.442695
        %v2134 = vpow.pop %v2133
        %v2135 = vmul.f32 %v2046, 1.442695
        %v2136 = vpow.pop %v2135
        %v2137 = vmul.f32 %v2047, 1.442695
        %v2138 = vpow.pop %v2137
        %v2139 = vmul.f32 %v2048, 1.442695
        %v2140 = vpow.pop %v2139
        %v2141 = vmul.f32 %v2049, 1.442695
        %v2142 = vpow.pop %v2141
        %v2143 = vmul.f32 %v2050, 1.442695
        %v2144 = vpow.pop %v2143
        %v2145 = vmul.f32 %v2051, 1.442695
        %v2146 = vpow.pop %v2145
        %v2147 = vmul.f32 %v2052, 1.442695
        %v2148 = vpow.pop %v2147
        %v2149 = vmul.f32 %v2053, 1.442695
        %v2150 = vpow.pop %v2149
        %v2151 = vmul.f32 %v2054, 1.442695
        %v2152 = vpow.pop %v2151
        %v2153 = vmul.f32 %v2055, 1.442695
        %v2154 = vpow.pop %v2153
        %v2155 = vmul.f32 %v2056, 1.442695
        %v2156 = vpow.pop %v2155
        %v2157 = vmul.f32 %v2057, 1.442695
        %v2158 = vpow.pop %v2157
        %v2159 = vmul.f32 %v2058, 1.442695
        %v2160 = vpow.pop %v2159
        %v2161 = vmul.f32 %v2059, 1.442695
        %v2162 = vpow.pop %v2161
        %v2163 = vmul.f32 %v2060, 1.442695
        %v2164 = vpow.pop %v2163
        %v2165 = vmul.f32 %v2061, 1.442695
        %v2166 = vpow.pop %v2165
        %v2167 = vmul.f32 %v2062, 1.442695
        %v2168 = vpow.pop %v2167
        %v2169 = vmul.f32 %v2063, 1.442695
        %v2170 = vpow.pop %v2169
        %v2171 = vmul.f32 %v2064, 1.442695
        %v2172 = vpow.pop %v2171
        %v2173 = vmul.f32 %v2065, 1.442695
        %v2174 = vpow.pop %v2173
        %v2175 = vmul.f32 %v2066, 1.442695
        %v2176 = vpow.pop %v2175
        %v2177 = vmul.f32 %v2067, 1.442695
        %v2178 = vpow.pop %v2177
        %v2179 = vmul.f32 %v2068, 1.442695
        %v2180 = vpow.pop %v2179
        %v2181 = vmul.f32 %v2069, 1.442695
        %v2182 = vpow.pop %v2181
        %v2183 = vmul.f32 %v2070, 1.442695
        %v2184 = vpow.pop %v2183
        %v2185 = vmul.f32 %v2071, 1.442695
        %v2186 = vpow.pop %v2185
        %v2187 = vmul.f32 %v2072, 1.442695
        %v2188 = vpow.pop %v2187
        %v2189 = vmul.f32 %v2073, 1.442695
        %v2190 = vpow.pop %v2189
        %v2191 = vmul.f32 %v2074, 1.442695
        %v2192 = vpow.pop %v2191
        %v2193 = vmul.f32 %v2075, 1.442695
        %v2194 = vpow.pop %v2193
        %v2195 = vmul.f32 %v2076, 1.442695
        %v2196 = vpow.pop %v2195
        %v2197 = vmul.f32 %v2077, 1.442695
        %v2198 = vpow.pop %v2197
        %v2199 = vmul.f32 %v2078, 1.442695
        %v2200 = vpow.pop %v2199
        %v2201 = vmul.f32 %v2079, 1.442695
        %v2202 = vpow.pop %v2201
        %v2203 = vmul.f32 %v2080, 1.442695
        %v2204 = vpow.pop %v2203
        %v2205 = vmul.f32 %v2081, 1.442695
        %v2206 = vpow.pop %v2205
        %v2207 = vmul.f32 %v2082, 1.442695
        %v2208 = vpow.pop %v2207
        %v2209 = vmul.f32 %v2083, 1.442695
        %v2210 = vpow.pop %v2209
        %v2211 = vmul.f32 %v2084, 1.442695
        %v2212 = vpow.pop %v2211
        %v2213 = vadd.f32 %v2086, 1.0
        %v2214 = vadd.f32 %v2088, 1.0
        %v2215 = vadd.f32 %v2090, 1.0
        %v2216 = vadd.f32 %v2092, 1.0
        %v2217 = vadd.f32 %v2094, 1.0
        %v2218 = vadd.f32 %v2096, 1.0
        %v2219 = vadd.f32 %v2098, 1.0
        %v2220 = vadd.f32 %v2100, 1.0
        %v2221 = vadd.f32 %v2102, 1.0
        %v2222 = vadd.f32 %v2104, 1.0
        %v2223 = vadd.f32 %v2106, 1.0
        %v2224 = vadd.f32 %v2108, 1.0
        %v2225 = vadd.f32 %v2110, 1.0
        %v2226 = vadd.f32 %v2112, 1.0
        %v2227 = vadd.f32 %v2114, 1.0
        %v2228 = vadd.f32 %v2116, 1.0
        %v2229 = vadd.f32 %v2118, 1.0
        %v2230 = vadd.f32 %v2120, 1.0
        %v2231 = vadd.f32 %v2122, 1.0
        %v2232 = vadd.f32 %v2124, 1.0
        %v2233 = vadd.f32 %v2126, 1.0
        %v2234 = vadd.f32 %v2128, 1.0
        %v2235 = vadd.f32 %v2130, 1.0
        %v2236 = vadd.f32 %v2132, 1.0
        %v2237 = vadd.f32 %v2134, 1.0
        %v2238 = vadd.f32 %v2136, 1.0
        %v2239 = vadd.f32 %v2138, 1.0
        %v2240 = vadd.f32 %v2140, 1.0
        %v2241 = vadd.f32 %v2142, 1.0
        %v2242 = vadd.f32 %v2144, 1.0
        %v2243 = vadd.f32 %v2146, 1.0
        %v2244 = vadd.f32 %v2148, 1.0
        %v2245 = vadd.f32 %v2150, 1.0
        %v2246 = vadd.f32 %v2152, 1.0
        %v2247 = vadd.f32 %v2154, 1.0
        %v2248 = vadd.f32 %v2156, 1.0
        %v2249 = vadd.f32 %v2158, 1.0
        %v2250 = vadd.f32 %v2160, 1.0
        %v2251 = vadd.f32 %v2162, 1.0
        %v2252 = vadd.f32 %v2164, 1.0
        %v2253 = vadd.f32 %v2166, 1.0
        %v2254 = vadd.f32 %v2168, 1.0
        %v2255 = vadd.f32 %v2170, 1.0
        %v2256 = vadd.f32 %v2172, 1.0
        %v2257 = vadd.f32 %v2174, 1.0
        %v2258 = vadd.f32 %v2176, 1.0
        %v2259 = vadd.f32 %v2178, 1.0
        %v2260 = vadd.f32 %v2180, 1.0
        %v2261 = vadd.f32 %v2182, 1.0
        %v2262 = vadd.f32 %v2184, 1.0
        %v2263 = vadd.f32 %v2186, 1.0
        %v2264 = vadd.f32 %v2188, 1.0
        %v2265 = vadd.f32 %v2190, 1.0
        %v2266 = vadd.f32 %v2192, 1.0
        %v2267 = vadd.f32 %v2194, 1.0
        %v2268 = vadd.f32 %v2196, 1.0
        %v2269 = vadd.f32 %v2198, 1.0
        %v2270 = vadd.f32 %v2200, 1.0
        %v2271 = vadd.f32 %v2202, 1.0
        %v2272 = vadd.f32 %v2204, 1.0
        %v2273 = vadd.f32 %v2206, 1.0
        %v2274 = vadd.f32 %v2208, 1.0
        %v2275 = vadd.f32 %v2210, 1.0
        %v2276 = vadd.f32 %v2212, 1.0
        %v2277 = vrcp.pop %v2213
        %v2278 = vrcp.pop %v2214
        %v2279 = vrcp.pop %v2215
        %v2280 = vrcp.pop %v2216
        %v2281 = vrcp.pop %v2217
        %v2282 = vrcp.pop %v2218
        %v2283 = vrcp.pop %v2219
        %v2284 = vrcp.pop %v2220
        %v2285 = vrcp.pop %v2221
        %v2286 = vrcp.pop %v2222
        %v2287 = vrcp.pop %v2223
        %v2288 = vrcp.pop %v2224
        %v2289 = vrcp.pop %v2225
        %v2290 = vrcp.pop %v2226
        %v2291 = vrcp.pop %v2227
        %v2292 = vrcp.pop %v2228
        %v2293 = vrcp.pop %v2229
        %v2294 = vrcp.pop %v2230
        %v2295 = vrcp.pop %v2231
        %v2296 = vrcp.pop %v2232
        %v2297 = vrcp.pop %v2233
        %v2298 = vrcp.pop %v2234
        %v2299 = vrcp.pop %v2235
        %v2300 = vrcp.pop %v2236
        %v2301 = vrcp.pop %v2237
        %v2302 = vrcp.pop %v2238
        %v2303 = vrcp.pop %v2239
        %v2304 = vrcp.pop %v2240
        %v2305 = vrcp.pop %v2241
        %v2306 = vrcp.pop %v2242
        %v2307 = vrcp.pop %v2243
        %v2308 = vrcp.pop %v2244
        %v2309 = vrcp.pop %v2245
        %v2310 = vrcp.pop %v2246
        %v2311 = vrcp.pop %v2247
        %v2312 = vrcp.pop %v2248
        %v2313 = vrcp.pop %v2249
        %v2314 = vrcp.pop %v2250
        %v2315 = vrcp.pop %v2251
        %v2316 = vrcp.pop %v2252
        %v2317 = vrcp.pop %v2253
        %v2318 = vrcp.pop %v2254
        %v2319 = vrcp.pop %v2255
        %v2320 = vrcp.pop %v2256
        %v2321 = vrcp.pop %v2257
        %v2322 = vrcp.pop %v2258
        %v2323 = vrcp.pop %v2259
        %v2324 = vrcp.pop %v2260
        %v2325 = vrcp.pop %v2261
        %v2326 = vrcp.pop %v2262
        %v2327 = vrcp.pop %v2263
        %v2328 = vrcp.pop %v2264
        %v2329 = vrcp.pop %v2265
        %v2330 = vrcp.pop %v2266
        %v2331 = vrcp.pop %v2267
        %v2332 = vrcp.pop %v2268
        %v2333 = vrcp.pop %v2269
        %v2334 = vrcp.pop %v2270
        %v2335 = vrcp.pop %v2271
        %v2336 = vrcp.pop %v2272
        %v2337 = vrcp.pop %v2273
        %v2338 = vrcp.pop %v2274
        %v2339 = vrcp.pop %v2275
        %v2340 = vrcp.pop %v2276
        %vm2341 = vcmask 7168
        %2342 = vst.msk [vmem:[%s353] sm:$0xff] %vm2341, %v2277
        %2343 = vst.msk [vmem:[%s353 + $0x8] sm:$0xff] %vm2341, %v2278
        %2344 = vst.msk [vmem:[%s353 + $0x10] sm:$0xff] %vm2341, %v2279
        %2345 = vst.msk [vmem:[%s353 + $0x18] sm:$0xff] %vm2341, %v2280
        %2346 = vst.msk [vmem:[%s353 + $0x20] sm:$0xff] %vm2341, %v2281
        %2347 = vst.msk [vmem:[%s353 + $0x28] sm:$0xff] %vm2341, %v2282
        %2348 = vst.msk [vmem:[%s353 + $0x30] sm:$0xff] %vm2341, %v2283
        %2349 = vst.msk [vmem:[%s353 + $0x38] sm:$0xff] %vm2341, %v2284
        %2350 = vst.msk [vmem:[%s353 + $0x40] sm:$0xff] %vm2341, %v2285
        %2351 = vst.msk [vmem:[%s353 + $0x48] sm:$0xff] %vm2341, %v2286
        %2352 = vst.msk [vmem:[%s353 + $0x50] sm:$0xff] %vm2341, %v2287
        %2353 = vst.msk [vmem:[%s353 + $0x58] sm:$0xff] %vm2341, %v2288
        %2354 = vst.msk [vmem:[%s353 + $0x60] sm:$0xff] %vm2341, %v2289
        %2355 = vst.msk [vmem:[%s353 + $0x68] sm:$0xff] %vm2341, %v2290
        %2356 = vst.msk [vmem:[%s353 + $0x70] sm:$0xff] %vm2341, %v2291
        %2357 = vst.msk [vmem:[%s353 + $0x78] sm:$0xff] %vm2341, %v2292
        %2358 = vst.msk [vmem:[%s353 + $0x80] sm:$0xff] %vm2341, %v2293
        %2359 = vst.msk [vmem:[%s353 + $0x88] sm:$0xff] %vm2341, %v2294
        %2360 = vst.msk [vmem:[%s353 + $0x90] sm:$0xff] %vm2341, %v2295
        %2361 = vst.msk [vmem:[%s353 + $0x98] sm:$0xff] %vm2341, %v2296
        %2362 = vst.msk [vmem:[%s353 + $0xa0] sm:$0xff] %vm2341, %v2297
        %2363 = vst.msk [vmem:[%s353 + $0xa8] sm:$0xff] %vm2341, %v2298
        %2364 = vst.msk [vmem:[%s353 + $0xb0] sm:$0xff] %vm2341, %v2299
        %2365 = vst.msk [vmem:[%s353 + $0xb8] sm:$0xff] %vm2341, %v2300
        %2366 = vst.msk [vmem:[%s353 + $0xc0] sm:$0xff] %vm2341, %v2301
        %2367 = vst.msk [vmem:[%s353 + $0xc8] sm:$0xff] %vm2341, %v2302
        %2368 = vst.msk [vmem:[%s353 + $0xd0] sm:$0xff] %vm2341, %v2303
        %2369 = vst.msk [vmem:[%s353 + $0xd8] sm:$0xff] %vm2341, %v2304
        %2370 = vst.msk [vmem:[%s353 + $0xe0] sm:$0xff] %vm2341, %v2305
        %2371 = vst.msk [vmem:[%s353 + $0xe8] sm:$0xff] %vm2341, %v2306
        %2372 = vst.msk [vmem:[%s353 + $0xf0] sm:$0xff] %vm2341, %v2307
        %2373 = vst.msk [vmem:[%s353 + $0xf8] sm:$0xff] %vm2341, %v2308
        %2374 = vst.msk [vmem:[%s353 + $0x100] sm:$0xff] %vm2341, %v2309
        %2375 = vst.msk [vmem:[%s353 + $0x108] sm:$0xff] %vm2341, %v2310
        %2376 = vst.msk [vmem:[%s353 + $0x110] sm:$0xff] %vm2341, %v2311
        %2377 = vst.msk [vmem:[%s353 + $0x118] sm:$0xff] %vm2341, %v2312
        %2378 = vst.msk [vmem:[%s353 + $0x120] sm:$0xff] %vm2341, %v2313
        %2379 = vst.msk [vmem:[%s353 + $0x128] sm:$0xff] %vm2341, %v2314
        %2380 = vst.msk [vmem:[%s353 + $0x130] sm:$0xff] %vm2341, %v2315
        %2381 = vst.msk [vmem:[%s353 + $0x138] sm:$0xff] %vm2341, %v2316
        %2382 = vst.msk [vmem:[%s353 + $0x140] sm:$0xff] %vm2341, %v2317
        %2383 = vst.msk [vmem:[%s353 + $0x148] sm:$0xff] %vm2341, %v2318
        %2384 = vst.msk [vmem:[%s353 + $0x150] sm:$0xff] %vm2341, %v2319
        %2385 = vst.msk [vmem:[%s353 + $0x158] sm:$0xff] %vm2341, %v2320
        %2386 = vst.msk [vmem:[%s353 + $0x160] sm:$0xff] %vm2341, %v2321
        %2387 = vst.msk [vmem:[%s353 + $0x168] sm:$0xff] %vm2341, %v2322
        %2388 = vst.msk [vmem:[%s353 + $0x170] sm:$0xff] %vm2341, %v2323
        %2389 = vst.msk [vmem:[%s353 + $0x178] sm:$0xff] %vm2341, %v2324
        %2390 = vst.msk [vmem:[%s353 + $0x180] sm:$0xff] %vm2341, %v2325
        %2391 = vst.msk [vmem:[%s353 + $0x188] sm:$0xff] %vm2341, %v2326
        %2392 = vst.msk [vmem:[%s353 + $0x190] sm:$0xff] %vm2341, %v2327
        %2393 = vst.msk [vmem:[%s353 + $0x198] sm:$0xff] %vm2341, %v2328
        %2394 = vst.msk [vmem:[%s353 + $0x1a0] sm:$0xff] %vm2341, %v2329
        %2395 = vst.msk [vmem:[%s353 + $0x1a8] sm:$0xff] %vm2341, %v2330
        %2396 = vst.msk [vmem:[%s353 + $0x1b0] sm:$0xff] %vm2341, %v2331
        %2397 = vst.msk [vmem:[%s353 + $0x1b8] sm:$0xff] %vm2341, %v2332
        %2398 = vst.msk [vmem:[%s353 + $0x1c0] sm:$0xff] %vm2341, %v2333
        %2399 = vst.msk [vmem:[%s353 + $0x1c8] sm:$0xff] %vm2341, %v2334
        %2400 = vst.msk [vmem:[%s353 + $0x1d0] sm:$0xff] %vm2341, %v2335
        %2401 = vst.msk [vmem:[%s353 + $0x1d8] sm:$0xff] %vm2341, %v2336
        %2402 = vst.msk [vmem:[%s353 + $0x1e0] sm:$0xff] %vm2341, %v2337
        %2403 = vst.msk [vmem:[%s353 + $0x1e8] sm:$0xff] %vm2341, %v2338
        %2404 = vst.msk [vmem:[%s353 + $0x1f0] sm:$0xff] %vm2341, %v2339
        %2405 = vst.msk [vmem:[%s353 + $0x1f8] sm:$0xff] %vm2341, %v2340
        %s2406 = smul.u32 64, %s24
        %p2407 = scmp.lt.s32.totalorder %s2406, 255
        %s2408 = scalar_select %p2407, %s2406, 255
        %s2409 = smul.addr %s2408, 8
        %s2410 = scalar_lea.vmem %s7, %s2409
        // Predicated region
        $region69: #{tpu_custom_call.1} parent=47 // pred_check
          %p2411 = pneg %p194
        $region70: #{tpu_custom_call.1} parent=47 // pred_check_branch
          %2413 = sbr.rel (%p2411) target = $region72
        $region71: #{tpu_custom_call.1} parent=47 // pred_region
          %s2414 = smul.u32 64, %s24
        $region72: #{tpu_custom_call.1} parent=47 // pred_fallthru
          _
      $region48: #{tpu_custom_call.1} parent=5 // pred_fallthru
        _
      %p2415 = scmp.le.s32.totalorder 2, %s19
      // Predicated region
      $region73: #{tpu_custom_call.1} parent=5 // pred_check
        %p2416 = pneg %p2415
      $region74: #{tpu_custom_call.1} parent=5 // pred_check_branch
        %2418 = sbr.rel (%p2416) target = $region76
      $region75: #{tpu_custom_call.1} parent=5 // pred_region
        %s2419 = ssub.s32 %s19, 2
        // Predicated region
        $region77: #{tpu_custom_call.1} parent=75 // pred_check
          %p2420 = pneg %p200
        $region78: #{tpu_custom_call.1} parent=75 // pred_check_branch
          %2422 = sbr.rel (%p2420) target = $region80
        $region79: #{tpu_custom_call.1} parent=75 // pred_region
          %s2423 = smul.u32 64, %s25
          %p2424 = scmp.lt.s32.totalorder %s2423, 255
          %s2425 = scalar_select %p2424, %s2423, 255
          %s2426 = smul.addr %s2425, 8
          %s2427 = scalar_lea.vmem %s7, %s2426
        $region80: #{tpu_custom_call.1} parent=75 // pred_fallthru
          _
      $region76: #{tpu_custom_call.1} parent=5 // pred_fallthru
        _
    $region6: #{tpu_custom_call.1} parent=1 // loop_footer
      %s23 = sadd.s32 1, %s19
    $region7: #{tpu_custom_call.1} parent=1 // loop_footer_branch
      %18 = sbr.rel target = $region3
    $region8: #{tpu_custom_call.1} parent=1 // loop_exit
      _
    %2428 = vsyncpa [#allocation4], 1
    %s2429 = scalar_lea.sflag [#allocation4], 1
    %2430 = vsyncpa %s2429, 1
    %2431 = vsyncpa [#allocation6], 1
    %2432 = vsyncpa [#allocation9], 1

</llo_original>
